<compile_context>
chip_gen: v6e
topology: v6e:2x2x1
jax: 0.10.0
libtpu: 0.0.40
codegen_flags: <defaults>
</compile_context>

<pallas_src>
import functools

import jax
import jax.numpy as jnp
import numpy as np
from jax import lax
from jax.experimental import pallas as pl
from jax.experimental.pallas import tpu as pltpu

EPS = 1e-5

# MXU operand dtype.  jnp.float32 matches the PyTorch module within 1e-3.
# On v6e/v7x set to jnp.bfloat16 (f32 accumulation kept via
# preferred_element_type) and relax the test tolerance to ~2e-2.
MXU_DTYPE = jnp.float32


def basic_block_kernel(x_ref, w1_ref, w2_ref, g1_ref, be1_ref,
                       g2_ref, be2_ref, gfold_ref, gcast_ref, out_ref,
                       *, N, H, W, C):
    rows = N * H
    WC = W * C
    inv_n = 1.0 / float(N * H * W)

    # Row masks for the dy=0 / dy=2 taps: zero at image top / bottom rows,
    # which also kills the circular wrap of the pltpu.roll shifts below.
    y_idx = lax.broadcasted_iota(jnp.int32, (rows, 1), 0) % H
    m_top = (y_idx != 0).astype(jnp.float32)
    m_bot = (y_idx != H - 1).astype(jnp.float32)

    def conv_bn(xin, w_ref, gamma, beta):
        # 3x3 conv as ONE wide MXU matmul: (rows, WC) @ (WC, 3*WC).  dx taps and
        # width zero-padding are folded into the fused block-banded weight, so
        # there are zero shifted-activation copies; dy alignment is two cheap
        # XLU sublane rolls of the (lane-aligned) result column blocks.
        r = jnp.dot(xin.astype(w_ref.dtype), w_ref[...],
                    preferred_element_type=jnp.float32)          # (rows, 3*WC)
        r0 = r[:, :WC]              # dy = 0 tap  (wants input row y-1)
        r1 = r[:, WC:2 * WC]        # dy = 1 tap  (center)
        r2 = r[:, 2 * WC:]          # dy = 2 tap  (wants input row y+1)
        r0s = pltpu.roll(r0, shift=1, axis=0)          # r0s[y] = r0[y-1]
        r2s = pltpu.roll(r2, shift=rows - 1, axis=0)   # r2s[y] = r2[y+1]
        # Conv bias intentionally dropped: exactly cancelled by BN mean-sub.
        a = r1 + m_top * r0s + m_bot * r2s                       # (rows, WC)

        # Fused single-pass training-mode BN (per-channel batch stats, biased
        # variance, eps=1e-5).
        # TODO(synk): switch to a two-pass / accumulator form for large
        #   N*H*W reductions (E[x^2]-mu^2 cancellation) on the gridded path.
        rs = jnp.sum(a, axis=0, keepdims=True)                   # (1, WC)
        rs2 = jnp.sum(a * a, axis=0, keepdims=True)              # (1, WC)
        stats = jnp.dot(jnp.concatenate([rs, rs2], axis=0), gfold_ref[...],
                        preferred_element_type=jnp.float32)      # (2, C)
        mu = stats[0:1, :] * inv_n
        var = stats[1:2, :] * inv_n - mu * mu
        scale = gamma * lax.rsqrt(var + EPS)                     # (1, C)
        shift = beta - mu * scale
        sb = jnp.dot(jnp.concatenate([scale, shift], axis=0), gcast_ref[...],
                     preferred_element_type=jnp.float32)         # (2, WC)
        return a * sb[0:1, :] + sb[1:2, :]

    x = x_ref[...]                                               # (rows, WC)

    # conv1 -> bn1 -> relu
    a1 = jnp.maximum(conv_bn(x, w1_ref, g1_ref[...], be1_ref[...]), 0.0)
    # conv2 -> bn2
    a2 = conv_bn(a1, w2_ref, g2_ref[...], be2_ref[...])
    # residual add (same lane-dense input) + relu; lane-dense store
    out_ref[...] = jnp.maximum(a2 + x, 0.0)


def _fused_banded_weight(w, W, dtype):
    """PyTorch (Cout, Cin, 3, 3) conv3x3 weight -> single (W*Cin, 3*W*Cout)
    fused block-banded matrix acting on lane-packed image rows.  Column block
    dy holds big[xi*Cin+ci, x*Cout+co] = w[co, ci, dy, xi-x+1] inside the band,
    0 outside (which also implements the width zero-padding)."""
    Co, Ci, _, _ = w.shape
    w_t = jnp.transpose(w, (2, 3, 1, 0)).astype(jnp.float32)     # (dy, dx, Ci, Co)
    xi = jnp.arange(W)
    xo = jnp.arange(W)
    d = jnp.arange(3)
    sel = (xi[None, :, None] == xo[None, None, :] + d[:, None, None] - 1)
    sel = sel.astype(jnp.float32)                                # (dx, W_in, W_out)
    big = jnp.einsum('kdio,dpx->kpixo', w_t, sel)                # (dy, W, Ci, W, Co)
    big = big.reshape(3, W * Ci, W * Co)
    return jnp.concatenate([big[0], big[1], big[2]], axis=1).astype(dtype)


def prepare_block_params(params, W, mxu_dtype=MXU_DTYPE):
    """Pack static per-weight-update operands (hoisted out of the forward)."""
    C = params["w1"].shape[0]
    eye = jnp.eye(C, dtype=jnp.float32)
    gfold = jnp.tile(eye, (W, 1))                                # (W*C, C)
    return {
        "w1": _fused_banded_weight(params["w1"], W, mxu_dtype),  # (WC, 3*WC)
        "w2": _fused_banded_weight(params["w2"], W, mxu_dtype),
        "g1": params["g1"].reshape(1, C).astype(jnp.float32),
        "g2": params["g2"].reshape(1, C).astype(jnp.float32),
        "be1": params["be1"].reshape(1, C).astype(jnp.float32),
        "be2": params["be2"].reshape(1, C).astype(jnp.float32),
        "gfold": gfold,                                          # fold  WC -> C
        "gcast": gfold.T,                                        # cast  C -> WC
        # b1/b2 intentionally not packed: conv bias is exactly cancelled by BN.
    }


def basic_block_forward_rows(x_rows, packed, *, N, H, W, C):
    """Core forward on the lane-dense (N*H, W*C) activation layout (so chained
    blocks can stay lane-dense between kernels)."""
    vmem = pl.BlockSpec(memory_space=pltpu.MemorySpace.VMEM)
    return pl.pallas_call(
        functools.partial(basic_block_kernel, N=N, H=H, W=W, C=C),
        out_shape=jax.ShapeDtypeStruct((N * H, W * C), jnp.float32),
        in_specs=[vmem] * 9,
        out_specs=vmem,
    )(x_rows, packed["w1"], packed["w2"], packed["g1"], packed["be1"],
      packed["g2"], packed["be2"], packed["gfold"], packed["gcast"])


def basic_block_forward(x_nchw, packed):
    """NCHW convenience wrapper (test only; avoid per-block transposes when
    chaining blocks)."""
    N, C, H, W = x_nchw.shape
    x_rows = jnp.transpose(x_nchw, (0, 2, 3, 1)).reshape(N * H, W * C)
    out_rows = basic_block_forward_rows(x_rows, packed, N=N, H=H, W=W, C=C)
    return jnp.transpose(out_rows.reshape(N, H, W, C), (0, 3, 1, 2))


def ref_forward(x, params):
    """Pure-JAX reference matching PyTorch BasicBlock.forward (training-mode BN,
    conv bias included)."""
    def conv(a, w, b):
        y = lax.conv_general_dilated(
            a, w, window_strides=(1, 1), padding=((1, 1), (1, 1)),
            dimension_numbers=("NCHW", "OIHW", "NCHW"))
        return y + b[None, :, None, None]

    def bn(a, g, be):
        mu = jnp.mean(a, axis=(0, 2, 3), keepdims=True)
        var = jnp.mean((a - mu) ** 2, axis=(0, 2, 3), keepdims=True)
        return (g[None, :, None, None] * (a - mu) / jnp.sqrt(var + EPS)
                + be[None, :, None, None])

    out = jnp.maximum(bn(conv(x, params["w1"], params["b1"]),
                         params["g1"], params["be1"]), 0.0)
    out = bn(conv(out, params["w2"], params["b2"]), params["g2"], params["be2"])
    return jnp.maximum(out + x, 0.0)


if __name__ == "__main__":
    N, C, H, W = 2, 16, 16, 16   # inplanes == planes (required by residual add)

    key = jax.random.PRNGKey(0)
    kx, kw1, kw2, kb1, kb2, kg1, kg2, kbe1, kbe2 = jax.random.split(key, 9)

    x = jax.random.normal(kx, (N, C, H, W), jnp.float32)
    params = {
        "w1": 0.1 * jax.random.normal(kw1, (C, C, 3, 3), jnp.float32),
        "w2": 0.1 * jax.random.normal(kw2, (C, C, 3, 3), jnp.float32),
        "b1": 0.1 * jax.random.normal(kb1, (C,), jnp.float32),
        "b2": 0.1 * jax.random.normal(kb2, (C,), jnp.float32),
        "g1": 1.0 + 0.1 * jax.random.normal(kg1, (C,), jnp.float32),
        "g2": 1.0 + 0.1 * jax.random.normal(kg2, (C,), jnp.float32),
        "be1": 0.1 * jax.random.normal(kbe1, (C,), jnp.float32),
        "be2": 0.1 * jax.random.normal(kbe2, (C,), jnp.float32),
    }

    packed = jax.tree_util.tree_map(jax.block_until_ready,
                                    prepare_block_params(params, W))

    out = jax.block_until_ready(basic_block_forward(x, packed))
    ref = jax.block_until_ready(ref_forward(x, params))
    np.testing.assert_allclose(np.asarray(out), np.asarray(ref),
                               rtol=1e-3, atol=1e-3)
    print("KERNEL_OK")
</pallas_src>

<mosaic_0001>
module attributes {stable_mosaic.version = 11 : i64} {
  func.func @basic_block_kernel(%arg0: memref<32x256xf32, #tpu.memory_space<vmem>>, %arg1: memref<256x768xf32, #tpu.memory_space<vmem>>, %arg2: memref<256x768xf32, #tpu.memory_space<vmem>>, %arg3: memref<1x16xf32, #tpu.memory_space<vmem>>, %arg4: memref<1x16xf32, #tpu.memory_space<vmem>>, %arg5: memref<1x16xf32, #tpu.memory_space<vmem>>, %arg6: memref<1x16xf32, #tpu.memory_space<vmem>>, %arg7: memref<256x16xf32, #tpu.memory_space<vmem>>, %arg8: memref<16x256xf32, #tpu.memory_space<vmem>>, %arg9: memref<32x256xf32, #tpu.memory_space<vmem>>) attributes {dimension_semantics = [], scalar_prefetch = 0 : i64, scratch_operands = 0 : i64, tpu.core_type = #tpu.core_type<tc>} {
    %0 = tpu.iota {dimensions = array<i32: 0>} : vector<32x1xi32>
    %c16_i32 = arith.constant 16 : i32
    %c0_i32 = arith.constant 0 : i32
    %1 = arith.cmpi eq, %c16_i32, %c0_i32 : i32
    %c1_i32 = arith.constant 1 : i32
    %2 = arith.select %1, %c1_i32, %c16_i32 : i32
    %3 = vector.broadcast %2 : i32 to vector<32x1xi32>
    %4 = arith.remsi %0, %3 : vector<32x1xi32>
    %c0_i32_0 = arith.constant 0 : i32
    %5 = vector.broadcast %c0_i32_0 : i32 to vector<32x1xi32>
    %6 = arith.cmpi ne, %4, %5 : vector<32x1xi32>
    %c0_i32_1 = arith.constant 0 : i32
    %7 = vector.broadcast %c0_i32_1 : i32 to vector<32x1xi32>
    %8 = arith.cmpi slt, %4, %7 : vector<32x1xi32>
    %c0_i32_2 = arith.constant 0 : i32
    %9 = arith.cmpi slt, %2, %c0_i32_2 : i32
    %10 = vector.broadcast %9 : i1 to vector<32x1xi1>
    %11 = vector.broadcast %10 : vector<32x1xi1> to vector<32x1xi1>
    %12 = arith.xori %8, %11 : vector<32x1xi1>
    %13 = arith.andi %12, %6 : vector<32x1xi1>
    %14 = vector.broadcast %2 : i32 to vector<32x1xi32>
    %15 = arith.addi %4, %14 : vector<32x1xi32>
    %16 = arith.select %13, %15, %4 : vector<32x1xi1>, vector<32x1xi32>
    %c0_i32_3 = arith.constant 0 : i32
    %17 = vector.broadcast %c0_i32_3 : i32 to vector<32x1xi32>
    %18 = arith.cmpi ne, %16, %17 : vector<32x1xi32>
    %19 = arith.extui %18 : vector<32x1xi1> to vector<32x1xi32>
    %20 = arith.sitofp %19 : vector<32x1xi32> to vector<32x1xf32>
    %c15_i32 = arith.constant 15 : i32
    %21 = vector.broadcast %c15_i32 : i32 to vector<32x1xi32>
    %22 = arith.cmpi ne, %16, %21 : vector<32x1xi32>
    %23 = arith.extui %22 : vector<32x1xi1> to vector<32x1xi32>
    %24 = arith.sitofp %23 : vector<32x1xi32> to vector<32x1xf32>
    %c0 = arith.constant 0 : index
    %c0_4 = arith.constant 0 : index
    %25 = vector.load %arg0[%c0, %c0_4] : memref<32x256xf32, #tpu.memory_space<vmem>>, vector<32x256xf32>
    %c0_5 = arith.constant 0 : index
    %c0_6 = arith.constant 0 : index
    %26 = vector.load %arg3[%c0_5, %c0_6] : memref<1x16xf32, #tpu.memory_space<vmem>>, vector<1x16xf32>
    %c0_7 = arith.constant 0 : index
    %c0_8 = arith.constant 0 : index
    %27 = vector.load %arg4[%c0_7, %c0_8] : memref<1x16xf32, #tpu.memory_space<vmem>>, vector<1x16xf32>
    %c0_9 = arith.constant 0 : index
    %c0_10 = arith.constant 0 : index
    %28 = vector.load %arg1[%c0_9, %c0_10] : memref<256x768xf32, #tpu.memory_space<vmem>>, vector<256x768xf32>
    %cst = arith.constant dense<0.000000e+00> : vector<32x768xf32>
    %29 = tpu.matmul %25, %28, %cst {dimension_numbers = #tpu.dot_dimension_numbers<[1], [0], [0], [1], [0, 0, 1, 1], [], []>} : vector<32x256xf32>, vector<256x768xf32>, vector<32x768xf32> -> vector<32x768xf32>
    %30 = vector.extract_strided_slice %29 {offsets = [0, 0], sizes = [32, 256], strides = [1, 1]} : vector<32x768xf32> to vector<32x256xf32>
    %31 = vector.extract_strided_slice %29 {offsets = [0, 256], sizes = [32, 256], strides = [1, 1]} : vector<32x768xf32> to vector<32x256xf32>
    %32 = vector.extract_strided_slice %29 {offsets = [0, 512], sizes = [32, 256], strides = [1, 1]} : vector<32x768xf32> to vector<32x256xf32>
    %c1_i32_11 = arith.constant 1 : i32
    %33 = tpu.dynamic_rotate %30 by %c1_i32_11 dim 0 : vector<32x256xf32>, i32 -> vector<32x256xf32>
    %c31_i32 = arith.constant 31 : i32
    %34 = tpu.dynamic_rotate %32 by %c31_i32 dim 0 : vector<32x256xf32>, i32 -> vector<32x256xf32>
    %35 = vector.broadcast %20 : vector<32x1xf32> to vector<32x256xf32>
    %36 = arith.mulf %35, %33 : vector<32x256xf32>
    %37 = arith.addf %31, %36 : vector<32x256xf32>
    %38 = vector.broadcast %24 : vector<32x1xf32> to vector<32x256xf32>
    %39 = arith.mulf %38, %34 : vector<32x256xf32>
    %40 = arith.addf %37, %39 : vector<32x256xf32>
    %cst_12 = arith.constant dense<0.000000e+00> : vector<256xf32>
    %41 = vector.multi_reduction <add>, %40, %cst_12 [0] : vector<32x256xf32> to vector<256xf32>
    %42 = vector.shape_cast %41 : vector<256xf32> to vector<1x256xf32>
    %43 = arith.mulf %40, %40 : vector<32x256xf32>
    %cst_13 = arith.constant dense<0.000000e+00> : vector<256xf32>
    %44 = vector.multi_reduction <add>, %43, %cst_13 [0] : vector<32x256xf32> to vector<256xf32>
    %45 = vector.shape_cast %44 : vector<256xf32> to vector<1x256xf32>
    %46 = tpu.concatenate %42, %45 in 0 : vector<1x256xf32>, vector<1x256xf32> -> vector<2x256xf32>
    %c0_14 = arith.constant 0 : index
    %c0_15 = arith.constant 0 : index
    %47 = vector.load %arg7[%c0_14, %c0_15] : memref<256x16xf32, #tpu.memory_space<vmem>>, vector<256x16xf32>
    %cst_16 = arith.constant dense<0.000000e+00> : vector<2x16xf32>
    %48 = tpu.matmul %46, %47, %cst_16 {dimension_numbers = #tpu.dot_dimension_numbers<[1], [0], [0], [1], [0, 0, 1, 1], [], []>} : vector<2x256xf32>, vector<256x16xf32>, vector<2x16xf32> -> vector<2x16xf32>
    %49 = vector.extract_strided_slice %48 {offsets = [0, 0], sizes = [1, 16], strides = [1, 1]} : vector<2x16xf32> to vector<1x16xf32>
    %cst_17 = arith.constant 0.001953125 : f32
    %50 = vector.broadcast %cst_17 : f32 to vector<1x16xf32>
    %51 = arith.mulf %49, %50 : vector<1x16xf32>
    %52 = vector.extract_strided_slice %48 {offsets = [1, 0], sizes = [1, 16], strides = [1, 1]} : vector<2x16xf32> to vector<1x16xf32>
    %cst_18 = arith.constant 0.001953125 : f32
    %53 = vector.broadcast %cst_18 : f32 to vector<1x16xf32>
    %54 = arith.mulf %52, %53 : vector<1x16xf32>
    %55 = arith.mulf %51, %51 : vector<1x16xf32>
    %56 = arith.subf %54, %55 : vector<1x16xf32>
    %cst_19 = arith.constant 9.99999974E-6 : f32
    %57 = vector.broadcast %cst_19 : f32 to vector<1x16xf32>
    %58 = arith.addf %56, %57 : vector<1x16xf32>
    %59 = math.rsqrt %58 : vector<1x16xf32>
    %60 = arith.mulf %26, %59 : vector<1x16xf32>
    %61 = arith.mulf %51, %60 : vector<1x16xf32>
    %62 = arith.subf %27, %61 : vector<1x16xf32>
    %63 = tpu.concatenate %60, %62 in 0 : vector<1x16xf32>, vector<1x16xf32> -> vector<2x16xf32>
    %c0_20 = arith.constant 0 : index
    %c0_21 = arith.constant 0 : index
    %64 = vector.load %arg8[%c0_20, %c0_21] : memref<16x256xf32, #tpu.memory_space<vmem>>, vector<16x256xf32>
    %cst_22 = arith.constant dense<0.000000e+00> : vector<2x256xf32>
    %65 = tpu.matmul %63, %64, %cst_22 {dimension_numbers = #tpu.dot_dimension_numbers<[1], [0], [0], [1], [0, 0, 1, 1], [], []>} : vector<2x16xf32>, vector<16x256xf32>, vector<2x256xf32> -> vector<2x256xf32>
    %66 = vector.extract_strided_slice %65 {offsets = [0, 0], sizes = [1, 256], strides = [1, 1]} : vector<2x256xf32> to vector<1x256xf32>
    %67 = vector.broadcast %66 : vector<1x256xf32> to vector<32x256xf32>
    %68 = arith.mulf %40, %67 : vector<32x256xf32>
    %69 = vector.extract_strided_slice %65 {offsets = [1, 0], sizes = [1, 256], strides = [1, 1]} : vector<2x256xf32> to vector<1x256xf32>
    %70 = vector.broadcast %69 : vector<1x256xf32> to vector<32x256xf32>
    %71 = arith.addf %68, %70 : vector<32x256xf32>
    %cst_23 = arith.constant 0.000000e+00 : f32
    %72 = vector.broadcast %cst_23 : f32 to vector<32x256xf32>
    %73 = arith.maximumf %71, %72 : vector<32x256xf32>
    %c0_24 = arith.constant 0 : index
    %c0_25 = arith.constant 0 : index
    %74 = vector.load %arg5[%c0_24, %c0_25] : memref<1x16xf32, #tpu.memory_space<vmem>>, vector<1x16xf32>
    %c0_26 = arith.constant 0 : index
    %c0_27 = arith.constant 0 : index
    %75 = vector.load %arg6[%c0_26, %c0_27] : memref<1x16xf32, #tpu.memory_space<vmem>>, vector<1x16xf32>
    %c0_28 = arith.constant 0 : index
    %c0_29 = arith.constant 0 : index
    %76 = vector.load %arg2[%c0_28, %c0_29] : memref<256x768xf32, #tpu.memory_space<vmem>>, vector<256x768xf32>
    %cst_30 = arith.constant dense<0.000000e+00> : vector<32x768xf32>
    %77 = tpu.matmul %73, %76, %cst_30 {dimension_numbers = #tpu.dot_dimension_numbers<[1], [0], [0], [1], [0, 0, 1, 1], [], []>} : vector<32x256xf32>, vector<256x768xf32>, vector<32x768xf32> -> vector<32x768xf32>
    %78 = vector.extract_strided_slice %77 {offsets = [0, 0], sizes = [32, 256], strides = [1, 1]} : vector<32x768xf32> to vector<32x256xf32>
    %79 = vector.extract_strided_slice %77 {offsets = [0, 256], sizes = [32, 256], strides = [1, 1]} : vector<32x768xf32> to vector<32x256xf32>
    %80 = vector.extract_strided_slice %77 {offsets = [0, 512], sizes = [32, 256], strides = [1, 1]} : vector<32x768xf32> to vector<32x256xf32>
    %c1_i32_31 = arith.constant 1 : i32
    %81 = tpu.dynamic_rotate %78 by %c1_i32_31 dim 0 : vector<32x256xf32>, i32 -> vector<32x256xf32>
    %c31_i32_32 = arith.constant 31 : i32
    %82 = tpu.dynamic_rotate %80 by %c31_i32_32 dim 0 : vector<32x256xf32>, i32 -> vector<32x256xf32>
    %83 = vector.broadcast %20 : vector<32x1xf32> to vector<32x256xf32>
    %84 = arith.mulf %83, %81 : vector<32x256xf32>
    %85 = arith.addf %79, %84 : vector<32x256xf32>
    %86 = vector.broadcast %24 : vector<32x1xf32> to vector<32x256xf32>
    %87 = arith.mulf %86, %82 : vector<32x256xf32>
    %88 = arith.addf %85, %87 : vector<32x256xf32>
    %cst_33 = arith.constant dense<0.000000e+00> : vector<256xf32>
    %89 = vector.multi_reduction <add>, %88, %cst_33 [0] : vector<32x256xf32> to vector<256xf32>
    %90 = vector.shape_cast %89 : vector<256xf32> to vector<1x256xf32>
    %91 = arith.mulf %88, %88 : vector<32x256xf32>
    %cst_34 = arith.constant dense<0.000000e+00> : vector<256xf32>
    %92 = vector.multi_reduction <add>, %91, %cst_34 [0] : vector<32x256xf32> to vector<256xf32>
    %93 = vector.shape_cast %92 : vector<256xf32> to vector<1x256xf32>
    %94 = tpu.concatenate %90, %93 in 0 : vector<1x256xf32>, vector<1x256xf32> -> vector<2x256xf32>
    %c0_35 = arith.constant 0 : index
    %c0_36 = arith.constant 0 : index
    %95 = vector.load %arg7[%c0_35, %c0_36] : memref<256x16xf32, #tpu.memory_space<vmem>>, vector<256x16xf32>
    %cst_37 = arith.constant dense<0.000000e+00> : vector<2x16xf32>
    %96 = tpu.matmul %94, %95, %cst_37 {dimension_numbers = #tpu.dot_dimension_numbers<[1], [0], [0], [1], [0, 0, 1, 1], [], []>} : vector<2x256xf32>, vector<256x16xf32>, vector<2x16xf32> -> vector<2x16xf32>
    %97 = vector.extract_strided_slice %96 {offsets = [0, 0], sizes = [1, 16], strides = [1, 1]} : vector<2x16xf32> to vector<1x16xf32>
    %cst_38 = arith.constant 0.001953125 : f32
    %98 = vector.broadcast %cst_38 : f32 to vector<1x16xf32>
    %99 = arith.mulf %97, %98 : vector<1x16xf32>
    %100 = vector.extract_strided_slice %96 {offsets = [1, 0], sizes = [1, 16], strides = [1, 1]} : vector<2x16xf32> to vector<1x16xf32>
    %cst_39 = arith.constant 0.001953125 : f32
    %101 = vector.broadcast %cst_39 : f32 to vector<1x16xf32>
    %102 = arith.mulf %100, %101 : vector<1x16xf32>
    %103 = arith.mulf %99, %99 : vector<1x16xf32>
    %104 = arith.subf %102, %103 : vector<1x16xf32>
    %cst_40 = arith.constant 9.99999974E-6 : f32
    %105 = vector.broadcast %cst_40 : f32 to vector<1x16xf32>
    %106 = arith.addf %104, %105 : vector<1x16xf32>
    %107 = math.rsqrt %106 : vector<1x16xf32>
    %108 = arith.mulf %74, %107 : vector<1x16xf32>
    %109 = arith.mulf %99, %108 : vector<1x16xf32>
    %110 = arith.subf %75, %109 : vector<1x16xf32>
    %111 = tpu.concatenate %108, %110 in 0 : vector<1x16xf32>, vector<1x16xf32> -> vector<2x16xf32>
    %c0_41 = arith.constant 0 : index
    %c0_42 = arith.constant 0 : index
    %112 = vector.load %arg8[%c0_41, %c0_42] : memref<16x256xf32, #tpu.memory_space<vmem>>, vector<16x256xf32>
    %cst_43 = arith.constant dense<0.000000e+00> : vector<2x256xf32>
    %113 = tpu.matmul %111, %112, %cst_43 {dimension_numbers = #tpu.dot_dimension_numbers<[1], [0], [0], [1], [0, 0, 1, 1], [], []>} : vector<2x16xf32>, vector<16x256xf32>, vector<2x256xf32> -> vector<2x256xf32>
    %114 = vector.extract_strided_slice %113 {offsets = [0, 0], sizes = [1, 256], strides = [1, 1]} : vector<2x256xf32> to vector<1x256xf32>
    %115 = vector.broadcast %114 : vector<1x256xf32> to vector<32x256xf32>
    %116 = arith.mulf %88, %115 : vector<32x256xf32>
    %117 = vector.extract_strided_slice %113 {offsets = [1, 0], sizes = [1, 256], strides = [1, 1]} : vector<2x256xf32> to vector<1x256xf32>
    %118 = vector.broadcast %117 : vector<1x256xf32> to vector<32x256xf32>
    %119 = arith.addf %116, %118 : vector<32x256xf32>
    %120 = arith.addf %119, %25 : vector<32x256xf32>
    %cst_44 = arith.constant 0.000000e+00 : f32
    %121 = vector.broadcast %cst_44 : f32 to vector<32x256xf32>
    %122 = arith.maximumf %120, %121 : vector<32x256xf32>
    %c0_45 = arith.constant 0 : index
    %c0_46 = arith.constant 0 : index
    %123 = vector.load %arg9[%c0_45, %c0_46] : memref<32x256xf32, #tpu.memory_space<vmem>>, vector<32x256xf32>
    tpu.vector_store %arg9[%c0_45, %c0_46], %122 {strides = array<i32>} : memref<32x256xf32, #tpu.memory_space<vmem>>, vector<32x256xf32>,
    return
  }
}

</mosaic_0001>

<llo_original>
// kernel: tpu_custom_call.1
$region0: #{tpu_custom_call.1}
  #allocation0 [shape = 'u32[]', space=smem, size = 0x4, offset = 0x4, fixed_abs, tag = 'smem constant byte address 0x4 - core index']
  #allocation1 [shape = 'u32[144,128]{1,0:T(1,128)}', space=vmem, size = 0x12000, scoped, tag = 'internal scratch']
  %s0 = inlined_call_operand.vmem [shape: f32[32,256], index: 0, kind: input, shape index: {}]
  %s1 = inlined_call_operand.hbm [shape: f32[256,768], index: 1, kind: input, shape index: {}]
  %s2 = inlined_call_operand.hbm [shape: f32[256,768], index: 2, kind: input, shape index: {}]
  %s3 = inlined_call_operand.vmem [shape: f32[1,16], index: 3, kind: input, shape index: {}]
  %s4 = inlined_call_operand.vmem [shape: f32[1,16], index: 4, kind: input, shape index: {}]
  %s5 = inlined_call_operand.vmem [shape: f32[1,16], index: 5, kind: input, shape index: {}]
  %s6 = inlined_call_operand.vmem [shape: f32[1,16], index: 6, kind: input, shape index: {}]
  %s7 = inlined_call_operand.vmem [shape: f32[256,16], index: 7, kind: input, shape index: {}]
  %s8 = inlined_call_operand.vmem [shape: f32[16,256], index: 8, kind: input, shape index: {}]
  %s9 = inlined_call_operand.hbm [shape: f32[32,256], index: 9, kind: output, shape index: {}]
  %s10 = sld [smem:[#allocation0]]
  $region54: #{tpu_custom_call.1} parent=0
    _
  %s12 = ssub.s32 1, %s10
  %s13 = scalar_select 0, %s12, %s10
  $region1: #{tpu_custom_call.1} parent=0
    #allocation2 [shape = 'u8[786432]{0}', space=vmem, size = 0xc0000, scoped, tag = 'input window, operand 1, single buffered']
    #allocation3 [shape = 's32[1]{0}', space=sflag, size = 0x4, scoped, tag = 'scoped memory for tpu_custom_call.1']
    #allocation4 [shape = 's32[1]{0}', space=sflag, size = 0x4, scoped, tag = 'scoped memory for tpu_custom_call.1']
    #allocation5 [shape = 'u8[786432]{0}', space=vmem, size = 0xc0000, scoped, tag = 'input window, operand 2, single buffered']
    #allocation6 [shape = 's32[1]{0}', space=sflag, size = 0x4, scoped, tag = 'scoped memory for tpu_custom_call.1']
    #allocation7 [shape = 'u8[32768]{0}', space=vmem, size = 0x8000, scoped, tag = 'output window, operand 0, single buffered']
    %14 = vsyncpa [#allocation3], 0
    %15 = vsyncpa [#allocation6], 0
    %16 = vsyncpa [#allocation4], 0
    // Predicated region
    $region2: #{tpu_custom_call.1} parent=1 // pred_check
      _
    $region3: #{tpu_custom_call.1} parent=1 // pred_check_branch
      %18 = sbr.rel (0) target = $region5
    $region4: #{tpu_custom_call.1} parent=1 // pred_region
      _
    $region5: #{tpu_custom_call.1} parent=1 // pred_fallthru
      _
    // Predicated region
    $region6: #{tpu_custom_call.1} parent=1 // pred_check
      _
    $region7: #{tpu_custom_call.1} parent=1 // pred_check_branch
      %20 = sbr.rel (0) target = $region9
    $region8: #{tpu_custom_call.1} parent=1 // pred_region
      %s22 = ssub.s32 24576, 24576
      %23 = vsyncadd [#allocation3], %s22
      %s24 = sshll.u32 [#allocation2], 4
      %s25 = int_to_ptr.vmem [resolvable:$true] %s24
      %30 = dma.hbm_to_vmem [thread:$0]  %s1, 24576, %s25, [#allocation3], 768, 768, 48
    $region9: #{tpu_custom_call.1} parent=1 // pred_fallthru
      _
    // Predicated region
    $region10: #{tpu_custom_call.1} parent=1 // pred_check
      _
    $region11: #{tpu_custom_call.1} parent=1 // pred_check_branch
      %32 = sbr.rel (0) target = $region13
    $region12: #{tpu_custom_call.1} parent=1 // pred_region
      %s34 = ssub.s32 24576, 24576
      %35 = vsyncadd [#allocation6], %s34
      %s36 = sshll.u32 [#allocation5], 4
      %s37 = int_to_ptr.vmem [resolvable:$true] %s36
      %42 = dma.hbm_to_vmem [thread:$0]  %s2, 24576, %s37, [#allocation6], 768, 768, 48
    $region13: #{tpu_custom_call.1} parent=1 // pred_fallthru
      _
    // Predicated region
    $region14: #{tpu_custom_call.1} parent=1 // pred_check
      _
    $region15: #{tpu_custom_call.1} parent=1 // pred_check_branch
      %44 = sbr.rel (0) target = $region17
    $region16: #{tpu_custom_call.1} parent=1 // pred_region
      _
    $region17: #{tpu_custom_call.1} parent=1 // pred_fallthru
      _
    // Predicated region
    $region18: #{tpu_custom_call.1} parent=1 // pred_check
      _
    $region19: #{tpu_custom_call.1} parent=1 // pred_check_branch
      %46 = sbr.rel (0) target = $region21
    $region20: #{tpu_custom_call.1} parent=1 // pred_region
      _
    $region21: #{tpu_custom_call.1} parent=1 // pred_fallthru
      _
    // Predicated region
    $region22: #{tpu_custom_call.1} parent=1 // pred_check
      _
    $region23: #{tpu_custom_call.1} parent=1 // pred_check_branch
      %48 = sbr.rel (0) target = $region25
    $region24: #{tpu_custom_call.1} parent=1 // pred_region
      _
    $region25: #{tpu_custom_call.1} parent=1 // pred_fallthru
      _
    // Predicated region
    $region26: #{tpu_custom_call.1} parent=1 // pred_check
      _
    $region27: #{tpu_custom_call.1} parent=1 // pred_check_branch
      %50 = sbr.rel (0) target = $region29
    $region28: #{tpu_custom_call.1} parent=1 // pred_region
      _
    $region29: #{tpu_custom_call.1} parent=1 // pred_fallthru
      _
    // Predicated region
    $region30: #{tpu_custom_call.1} parent=1 // pred_check
      _
    $region31: #{tpu_custom_call.1} parent=1 // pred_check_branch
      %52 = sbr.rel (0) target = $region33
    $region32: #{tpu_custom_call.1} parent=1 // pred_region
      _
    $region33: #{tpu_custom_call.1} parent=1 // pred_fallthru
      _
    // Predicated region
    $region34: #{tpu_custom_call.1} parent=1 // pred_check
      _
    $region35: #{tpu_custom_call.1} parent=1 // pred_check_branch
      %54 = sbr.rel (0) target = $region37
    $region36: #{tpu_custom_call.1} parent=1 // pred_region
      _
    $region37: #{tpu_custom_call.1} parent=1 // pred_fallthru
      _
    // Predicated region
    $region38: #{tpu_custom_call.1} parent=1 // pred_check
      _
    $region39: #{tpu_custom_call.1} parent=1 // pred_check_branch
      %56 = sbr.rel (0) target = $region41
    $region40: #{tpu_custom_call.1} parent=1 // pred_region
      %57 = dma.done [#allocation3], 24576
    $region41: #{tpu_custom_call.1} parent=1 // pred_fallthru
      _
    // Predicated region
    $region42: #{tpu_custom_call.1} parent=1 // pred_check
      _
    $region43: #{tpu_custom_call.1} parent=1 // pred_check_branch
      %59 = sbr.rel (0) target = $region45
    $region44: #{tpu_custom_call.1} parent=1 // pred_region
      %60 = dma.done [#allocation6], 24576
    $region45: #{tpu_custom_call.1} parent=1 // pred_fallthru
      _
    %v61 = vlaneseq
    %v62 = vshrl.u32 %v61, 7
    %v63 = vadd.s32 %v62, 8
    %v64 = vadd.s32 %v62, 16
    %v65 = vadd.s32 %v62, 24
    %vm66 = vcmp.lt.s32.totalorder %v62, 0
    %v67 = vsub.s32 0, %v62
    %v68 = vsel %vm66, %v67, %v62
    %v69 = vshrl.u32 %v68, 4
    %v70 = vand.u32 %v68, 15
    %v71 = vsub.s32 0, %v70
    %v72 = vsel %vm66, %v71, %v70
    %vm73 = vcmp.lt.s32.totalorder %v63, 0
    %v74 = vsub.s32 0, %v63
    %v75 = vsel %vm73, %v74, %v63
    %v76 = vshrl.u32 %v75, 4
    %v77 = vand.u32 %v75, 15
    %v78 = vsub.s32 0, %v77
    %v79 = vsel %vm73, %v78, %v77
    %vm80 = vcmp.lt.s32.totalorder %v64, 0
    %v81 = vsub.s32 0, %v64
    %v82 = vsel %vm80, %v81, %v64
    %v83 = vshrl.u32 %v82, 4
    %v84 = vand.u32 %v82, 15
    %v85 = vsub.s32 0, %v84
    %v86 = vsel %vm80, %v85, %v84
    %vm87 = vcmp.lt.s32.totalorder %v65, 0
    %v88 = vsub.s32 0, %v65
    %v89 = vsel %vm87, %v88, %v65
    %v90 = vshrl.u32 %v89, 4
    %v91 = vand.u32 %v89, 15
    %v92 = vsub.s32 0, %v91
    %v93 = vsel %vm87, %v92, %v91
    %vm94 = vcmp.ne.s32.totalorder %v72, 0
    %vm95 = vcmp.ne.s32.totalorder %v79, 0
    %vm96 = vcmp.ne.s32.totalorder %v86, 0
    %vm97 = vcmp.ne.s32.totalorder %v93, 0
    %vm98 = vcmp.lt.s32.totalorder %v72, 0
    %vm99 = vcmp.lt.s32.totalorder %v79, 0
    %vm100 = vcmp.lt.s32.totalorder %v86, 0
    %vm101 = vcmp.lt.s32.totalorder %v93, 0
    %vm102 = vmand %vm98, %vm94
    %vm103 = vmand %vm99, %vm95
    %vm104 = vmand %vm100, %vm96
    %vm105 = vmand %vm101, %vm97
    %v106 = vadd.s32 %v72, 16
    %v107 = vadd.s32 %v79, 16
    %v108 = vadd.s32 %v86, 16
    %v109 = vadd.s32 %v93, 16
    %v110 = vsel %vm102, %v106, %v72
    %v111 = vsel %vm103, %v107, %v79
    %v112 = vsel %vm104, %v108, %v86
    %v113 = vsel %vm105, %v109, %v93
    %vm114 = vcmp.ne.s32.totalorder %v110, 0
    %vm115 = vcmp.ne.s32.totalorder %v111, 0
    %vm116 = vcmp.ne.s32.totalorder %v112, 0
    %vm117 = vcmp.ne.s32.totalorder %v113, 0
    %v118 = vsel %vm114, 1, 0
    %v119 = vsel %vm115, 1, 0
    %v120 = vsel %vm116, 1, 0
    %v121 = vsel %vm117, 1, 0
    %v122 = vcvt.s32.f32 %v118
    %v123 = vcvt.s32.f32 %v119
    %v124 = vcvt.s32.f32 %v120
    %v125 = vcvt.s32.f32 %v121
    %vm126 = vcmp.ne.s32.totalorder %v110, 15
    %vm127 = vcmp.ne.s32.totalorder %v111, 15
    %vm128 = vcmp.ne.s32.totalorder %v112, 15
    %vm129 = vcmp.ne.s32.totalorder %v113, 15
    %v130 = vsel %vm126, 1, 0
    %v131 = vsel %vm127, 1, 0
    %v132 = vsel %vm128, 1, 0
    %v133 = vsel %vm129, 1, 0
    %v134 = vcvt.s32.f32 %v130
    %v135 = vcvt.s32.f32 %v131
    %v136 = vcvt.s32.f32 %v132
    %v137 = vcvt.s32.f32 %v133
    %v138 = vld [vmem:[%s0] sm:$0xff]
    %v139 = vld [vmem:[%s0 + $0x8] sm:$0xff]
    %v140 = vld [vmem:[%s0 + $0x10] sm:$0xff]
    %v141 = vld [vmem:[%s0 + $0x18] sm:$0xff]
    %v142 = vld [vmem:[%s0 + $0x20] sm:$0xff]
    %v143 = vld [vmem:[%s0 + $0x28] sm:$0xff]
    %v144 = vld [vmem:[%s0 + $0x30] sm:$0xff]
    %v145 = vld [vmem:[%s0 + $0x38] sm:$0xff]
    %v146 = vld [vmem:[%s3] sm:$0x1]
    %v147 = vld [vmem:[%s4] sm:$0x1]
    %v148 = vld [vmem:[#allocation2] sm:$0xff]
    %v149 = vld [vmem:[#allocation2 + $0x8] sm:$0xff]
    %v150 = vld [vmem:[#allocation2 + $0x10] sm:$0xff]
    %v151 = vld [vmem:[#allocation2 + $0x18] sm:$0xff]
    %v152 = vld [vmem:[#allocation2 + $0x20] sm:$0xff]
    %v153 = vld [vmem:[#allocation2 + $0x28] sm:$0xff]
    %v154 = vld [vmem:[#allocation2 + $0x30] sm:$0xff]
    %v155 = vld [vmem:[#allocation2 + $0x38] sm:$0xff]
    %v156 = vld [vmem:[#allocation2 + $0x40] sm:$0xff]
    %v157 = vld [vmem:[#allocation2 + $0x48] sm:$0xff]
    %v158 = vld [vmem:[#allocation2 + $0x50] sm:$0xff]
    %v159 = vld [vmem:[#allocation2 + $0x58] sm:$0xff]
    %v160 = vld [vmem:[#allocation2 + $0x60] sm:$0xff]
    %v161 = vld [vmem:[#allocation2 + $0x68] sm:$0xff]
    %v162 = vld [vmem:[#allocation2 + $0x70] sm:$0xff]
    %v163 = vld [vmem:[#allocation2 + $0x78] sm:$0xff]
    %v164 = vld [vmem:[#allocation2 + $0x80] sm:$0xff]
    %v165 = vld [vmem:[#allocation2 + $0x88] sm:$0xff]
    %v166 = vld [vmem:[#allocation2 + $0x90] sm:$0xff]
    %v167 = vld [vmem:[#allocation2 + $0x98] sm:$0xff]
    %v168 = vld [vmem:[#allocation2 + $0xa0] sm:$0xff]
    %v169 = vld [vmem:[#allocation2 + $0xa8] sm:$0xff]
    %v170 = vld [vmem:[#allocation2 + $0xb0] sm:$0xff]
    %v171 = vld [vmem:[#allocation2 + $0xb8] sm:$0xff]
    %v172 = vld [vmem:[#allocation2 + $0xc0] sm:$0xff]
    %v173 = vld [vmem:[#allocation2 + $0xc8] sm:$0xff]
    %v174 = vld [vmem:[#allocation2 + $0xd0] sm:$0xff]
    %v175 = vld [vmem:[#allocation2 + $0xd8] sm:$0xff]
    %v176 = vld [vmem:[#allocation2 + $0xe0] sm:$0xff]
    %v177 = vld [vmem:[#allocation2 + $0xe8] sm:$0xff]
    %v178 = vld [vmem:[#allocation2 + $0xf0] sm:$0xff]
    %v179 = vld [vmem:[#allocation2 + $0xf8] sm:$0xff]
    %v180 = vld [vmem:[#allocation2 + $0x100] sm:$0xff]
    %v181 = vld [vmem:[#allocation2 + $0x108] sm:$0xff]
    %v182 = vld [vmem:[#allocation2 + $0x110] sm:$0xff]
    %v183 = vld [vmem:[#allocation2 + $0x118] sm:$0xff]
    %v184 = vld [vmem:[#allocation2 + $0x120] sm:$0xff]
    %v185 = vld [vmem:[#allocation2 + $0x128] sm:$0xff]
    %v186 = vld [vmem:[#allocation2 + $0x130] sm:$0xff]
    %v187 = vld [vmem:[#allocation2 + $0x138] sm:$0xff]
    %v188 = vld [vmem:[#allocation2 + $0x140] sm:$0xff]
    %v189 = vld [vmem:[#allocation2 + $0x148] sm:$0xff]
    %v190 = vld [vmem:[#allocation2 + $0x150] sm:$0xff]
    %v191 = vld [vmem:[#allocation2 + $0x158] sm:$0xff]
    %v192 = vld [vmem:[#allocation2 + $0x160] sm:$0xff]
    %v193 = vld [vmem:[#allocation2 + $0x168] sm:$0xff]
    %v194 = vld [vmem:[#allocation2 + $0x170] sm:$0xff]
    %v195 = vld [vmem:[#allocation2 + $0x178] sm:$0xff]
    %v196 = vld [vmem:[#allocation2 + $0x180] sm:$0xff]
    %v197 = vld [vmem:[#allocation2 + $0x188] sm:$0xff]
    %v198 = vld [vmem:[#allocation2 + $0x190] sm:$0xff]
    %v199 = vld [vmem:[#allocation2 + $0x198] sm:$0xff]
    %v200 = vld [vmem:[#allocation2 + $0x1a0] sm:$0xff]
    %v201 = vld [vmem:[#allocation2 + $0x1a8] sm:$0xff]
    %v202 = vld [vmem:[#allocation2 + $0x1b0] sm:$0xff]
    %v203 = vld [vmem:[#allocation2 + $0x1b8] sm:$0xff]
    %v204 = vld [vmem:[#allocation2 + $0x1c0] sm:$0xff]
    %v205 = vld [vmem:[#allocation2 + $0x1c8] sm:$0xff]
    %v206 = vld [vmem:[#allocation2 + $0x1d0] sm:$0xff]
    %v207 = vld [vmem:[#allocation2 + $0x1d8] sm:$0xff]
    %v208 = vld [vmem:[#allocation2 + $0x1e0] sm:$0xff]
    %v209 = vld [vmem:[#allocation2 + $0x1e8] sm:$0xff]
    %v210 = vld [vmem:[#allocation2 + $0x1f0] sm:$0xff]
    %v211 = vld [vmem:[#allocation2 + $0x1f8] sm:$0xff]
    %v212 = vld [vmem:[#allocation2 + $0x200] sm:$0xff]
    %v213 = vld [vmem:[#allocation2 + $0x208] sm:$0xff]
    %v214 = vld [vmem:[#allocation2 + $0x210] sm:$0xff]
    %v215 = vld [vmem:[#allocation2 + $0x218] sm:$0xff]
    %v216 = vld [vmem:[#allocation2 + $0x220] sm:$0xff]
    %v217 = vld [vmem:[#allocation2 + $0x228] sm:$0xff]
    %v218 = vld [vmem:[#allocation2 + $0x230] sm:$0xff]
    %v219 = vld [vmem:[#allocation2 + $0x238] sm:$0xff]
    %v220 = vld [vmem:[#allocation2 + $0x240] sm:$0xff]
    %v221 = vld [vmem:[#allocation2 + $0x248] sm:$0xff]
    %v222 = vld [vmem:[#allocation2 + $0x250] sm:$0xff]
    %v223 = vld [vmem:[#allocation2 + $0x258] sm:$0xff]
    %v224 = vld [vmem:[#allocation2 + $0x260] sm:$0xff]
    %v225 = vld [vmem:[#allocation2 + $0x268] sm:$0xff]
    %v226 = vld [vmem:[#allocation2 + $0x270] sm:$0xff]
    %v227 = vld [vmem:[#allocation2 + $0x278] sm:$0xff]
    %v228 = vld [vmem:[#allocation2 + $0x280] sm:$0xff]
    %v229 = vld [vmem:[#allocation2 + $0x288] sm:$0xff]
    %v230 = vld [vmem:[#allocation2 + $0x290] sm:$0xff]
    %v231 = vld [vmem:[#allocation2 + $0x298] sm:$0xff]
    %v232 = vld [vmem:[#allocation2 + $0x2a0] sm:$0xff]
    %v233 = vld [vmem:[#allocation2 + $0x2a8] sm:$0xff]
    %v234 = vld [vmem:[#allocation2 + $0x2b0] sm:$0xff]
    %v235 = vld [vmem:[#allocation2 + $0x2b8] sm:$0xff]
    %v236 = vld [vmem:[#allocation2 + $0x2c0] sm:$0xff]
    %v237 = vld [vmem:[#allocation2 + $0x2c8] sm:$0xff]
    %v238 = vld [vmem:[#allocation2 + $0x2d0] sm:$0xff]
    %v239 = vld [vmem:[#allocation2 + $0x2d8] sm:$0xff]
    %v240 = vld [vmem:[#allocation2 + $0x2e0] sm:$0xff]
    %v241 = vld [vmem:[#allocation2 + $0x2e8] sm:$0xff]
    %v242 = vld [vmem:[#allocation2 + $0x2f0] sm:$0xff]
    %v243 = vld [vmem:[#allocation2 + $0x2f8] sm:$0xff]
    %v244 = vld [vmem:[#allocation2 + $0x300] sm:$0xff]
    %v245 = vld [vmem:[#allocation2 + $0x308] sm:$0xff]
    %v246 = vld [vmem:[#allocation2 + $0x310] sm:$0xff]
    %v247 = vld [vmem:[#allocation2 + $0x318] sm:$0xff]
    %v248 = vld [vmem:[#allocation2 + $0x320] sm:$0xff]
    %v249 = vld [vmem:[#allocation2 + $0x328] sm:$0xff]
    %v250 = vld [vmem:[#allocation2 + $0x330] sm:$0xff]
    %v251 = vld [vmem:[#allocation2 + $0x338] sm:$0xff]
    %v252 = vld [vmem:[#allocation2 + $0x340] sm:$0xff]
    %v253 = vld [vmem:[#allocation2 + $0x348] sm:$0xff]
    %v254 = vld [vmem:[#allocation2 + $0x350] sm:$0xff]
    %v255 = vld [vmem:[#allocation2 + $0x358] sm:$0xff]
    %v256 = vld [vmem:[#allocation2 + $0x360] sm:$0xff]
    %v257 = vld [vmem:[#allocation2 + $0x368] sm:$0xff]
    %v258 = vld [vmem:[#allocation2 + $0x370] sm:$0xff]
    %v259 = vld [vmem:[#allocation2 + $0x378] sm:$0xff]
    %v260 = vld [vmem:[#allocation2 + $0x380] sm:$0xff]
    %v261 = vld [vmem:[#allocation2 + $0x388] sm:$0xff]
    %v262 = vld [vmem:[#allocation2 + $0x390] sm:$0xff]
    %v263 = vld [vmem:[#allocation2 + $0x398] sm:$0xff]
    %v264 = vld [vmem:[#allocation2 + $0x3a0] sm:$0xff]
    %v265 = vld [vmem:[#allocation2 + $0x3a8] sm:$0xff]
    %v266 = vld [vmem:[#allocation2 + $0x3b0] sm:$0xff]
    %v267 = vld [vmem:[#allocation2 + $0x3b8] sm:$0xff]
    %v268 = vld [vmem:[#allocation2 + $0x3c0] sm:$0xff]
    %v269 = vld [vmem:[#allocation2 + $0x3c8] sm:$0xff]
    %v270 = vld [vmem:[#allocation2 + $0x3d0] sm:$0xff]
    %v271 = vld [vmem:[#allocation2 + $0x3d8] sm:$0xff]
    %v272 = vld [vmem:[#allocation2 + $0x3e0] sm:$0xff]
    %v273 = vld [vmem:[#allocation2 + $0x3e8] sm:$0xff]
    %v274 = vld [vmem:[#allocation2 + $0x3f0] sm:$0xff]
    %v275 = vld [vmem:[#allocation2 + $0x3f8] sm:$0xff]
    %v276 = vld [vmem:[#allocation2 + $0x400] sm:$0xff]
    %v277 = vld [vmem:[#allocation2 + $0x408] sm:$0xff]
    %v278 = vld [vmem:[#allocation2 + $0x410] sm:$0xff]
    %v279 = vld [vmem:[#allocation2 + $0x418] sm:$0xff]
    %v280 = vld [vmem:[#allocation2 + $0x420] sm:$0xff]
    %v281 = vld [vmem:[#allocation2 + $0x428] sm:$0xff]
    %v282 = vld [vmem:[#allocation2 + $0x430] sm:$0xff]
    %v283 = vld [vmem:[#allocation2 + $0x438] sm:$0xff]
    %v284 = vld [vmem:[#allocation2 + $0x440] sm:$0xff]
    %v285 = vld [vmem:[#allocation2 + $0x448] sm:$0xff]
    %v286 = vld [vmem:[#allocation2 + $0x450] sm:$0xff]
    %v287 = vld [vmem:[#allocation2 + $0x458] sm:$0xff]
    %v288 = vld [vmem:[#allocation2 + $0x460] sm:$0xff]
    %v289 = vld [vmem:[#allocation2 + $0x468] sm:$0xff]
    %v290 = vld [vmem:[#allocation2 + $0x470] sm:$0xff]
    %v291 = vld [vmem:[#allocation2 + $0x478] sm:$0xff]
    %v292 = vld [vmem:[#allocation2 + $0x480] sm:$0xff]
    %v293 = vld [vmem:[#allocation2 + $0x488] sm:$0xff]
    %v294 = vld [vmem:[#allocation2 + $0x490] sm:$0xff]
    %v295 = vld [vmem:[#allocation2 + $0x498] sm:$0xff]
    %v296 = vld [vmem:[#allocation2 + $0x4a0] sm:$0xff]
    %v297 = vld [vmem:[#allocation2 + $0x4a8] sm:$0xff]
    %v298 = vld [vmem:[#allocation2 + $0x4b0] sm:$0xff]
    %v299 = vld [vmem:[#allocation2 + $0x4b8] sm:$0xff]
    %v300 = vld [vmem:[#allocation2 + $0x4c0] sm:$0xff]
    %v301 = vld [vmem:[#allocation2 + $0x4c8] sm:$0xff]
    %v302 = vld [vmem:[#allocation2 + $0x4d0] sm:$0xff]
    %v303 = vld [vmem:[#allocation2 + $0x4d8] sm:$0xff]
    %v304 = vld [vmem:[#allocation2 + $0x4e0] sm:$0xff]
    %v305 = vld [vmem:[#allocation2 + $0x4e8] sm:$0xff]
    %v306 = vld [vmem:[#allocation2 + $0x4f0] sm:$0xff]
    %v307 = vld [vmem:[#allocation2 + $0x4f8] sm:$0xff]
    %v308 = vld [vmem:[#allocation2 + $0x500] sm:$0xff]
    %v309 = vld [vmem:[#allocation2 + $0x508] sm:$0xff]
    %v310 = vld [vmem:[#allocation2 + $0x510] sm:$0xff]
    %v311 = vld [vmem:[#allocation2 + $0x518] sm:$0xff]
    %v312 = vld [vmem:[#allocation2 + $0x520] sm:$0xff]
    %v313 = vld [vmem:[#allocation2 + $0x528] sm:$0xff]
    %v314 = vld [vmem:[#allocation2 + $0x530] sm:$0xff]
    %v315 = vld [vmem:[#allocation2 + $0x538] sm:$0xff]
    %v316 = vld [vmem:[#allocation2 + $0x540] sm:$0xff]
    %v317 = vld [vmem:[#allocation2 + $0x548] sm:$0xff]
    %v318 = vld [vmem:[#allocation2 + $0x550] sm:$0xff]
    %v319 = vld [vmem:[#allocation2 + $0x558] sm:$0xff]
    %v320 = vld [vmem:[#allocation2 + $0x560] sm:$0xff]
    %v321 = vld [vmem:[#allocation2 + $0x568] sm:$0xff]
    %v322 = vld [vmem:[#allocation2 + $0x570] sm:$0xff]
    %v323 = vld [vmem:[#allocation2 + $0x578] sm:$0xff]
    %v324 = vld [vmem:[#allocation2 + $0x580] sm:$0xff]
    %v325 = vld [vmem:[#allocation2 + $0x588] sm:$0xff]
    %v326 = vld [vmem:[#allocation2 + $0x590] sm:$0xff]
    %v327 = vld [vmem:[#allocation2 + $0x598] sm:$0xff]
    %v328 = vld [vmem:[#allocation2 + $0x5a0] sm:$0xff]
    %v329 = vld [vmem:[#allocation2 + $0x5a8] sm:$0xff]
    %v330 = vld [vmem:[#allocation2 + $0x5b0] sm:$0xff]
    %v331 = vld [vmem:[#allocation2 + $0x5b8] sm:$0xff]
    %v332 = vld [vmem:[#allocation2 + $0x5c0] sm:$0xff]
    %v333 = vld [vmem:[#allocation2 + $0x5c8] sm:$0xff]
    %v334 = vld [vmem:[#allocation2 + $0x5d0] sm:$0xff]
    %v335 = vld [vmem:[#allocation2 + $0x5d8] sm:$0xff]
    %v336 = vld [vmem:[#allocation2 + $0x5e0] sm:$0xff]
    %v337 = vld [vmem:[#allocation2 + $0x5e8] sm:$0xff]
    %v338 = vld [vmem:[#allocation2 + $0x5f0] sm:$0xff]
    %v339 = vld [vmem:[#allocation2 + $0x5f8] sm:$0xff]
    %340 = vmatprep.subr.mxu0 %v239
    %341 = vmatpush1.msra.mxu0 %v238
    %342 = vmatprep.subr.mxu0 %v233
    %343 = vmatpush1.msra.mxu0 %v232
    %344 = vmatprep.subr.mxu0 %v227
    %345 = vmatpush1.msra.mxu0 %v226
    %346 = vmatprep.subr.mxu0 %v221
    %347 = vmatpush1.msra.mxu0 %v220
    %348 = vmatprep.subr.mxu0 %v215
    %349 = vmatpush1.msra.mxu0 %v214
    %350 = vmatprep.subr.mxu0 %v209
    %351 = vmatpush1.msra.mxu0 %v208
    %352 = vmatprep.subr.mxu0 %v203
    %353 = vmatpush1.msra.mxu0 %v202
    %354 = vmatprep.subr.mxu0 %v197
    %355 = vmatpush1.msra.mxu0 %v196
    %356 = vmatprep.subr.mxu0 %v191
    %357 = vmatpush1.msra.mxu0 %v190
    %358 = vmatprep.subr.mxu0 %v185
    %359 = vmatpush1.msra.mxu0 %v184
    %360 = vmatprep.subr.mxu0 %v179
    %361 = vmatpush1.msra.mxu0 %v178
    %362 = vmatprep.subr.mxu0 %v173
    %363 = vmatpush1.msra.mxu0 %v172
    %364 = vmatprep.subr.mxu0 %v167
    %365 = vmatpush1.msra.mxu0 %v166
    %366 = vmatprep.subr.mxu0 %v161
    %367 = vmatpush1.msra.mxu0 %v160
    %368 = vmatprep.subr.mxu0 %v155
    %369 = vmatpush1.msra.mxu0 %v154
    %370 = vmatprep.subr.mxu0 %v149
    %371 = vmatpush1.msra.mxu0 %v148
    %372 = vmatprep.subr.mxu0 %v335
    %373 = vmatpush2.msra.mxu0 %v334
    %374 = vmatprep.subr.mxu0 %v329
    %375 = vmatpush2.msra.mxu0 %v328
    %376 = vmatprep.subr.mxu0 %v323
    %377 = vmatpush2.msra.mxu0 %v322
    %378 = vmatprep.subr.mxu0 %v317
    %379 = vmatpush2.msra.mxu0 %v316
    %380 = vmatprep.subr.mxu0 %v311
    %381 = vmatpush2.msra.mxu0 %v310
    %382 = vmatprep.subr.mxu0 %v305
    %383 = vmatpush2.msra.mxu0 %v304
    %384 = vmatprep.subr.mxu0 %v299
    %385 = vmatpush2.msra.mxu0 %v298
    %386 = vmatprep.subr.mxu0 %v293
    %387 = vmatpush2.msra.mxu0 %v292
    %388 = vmatprep.subr.mxu0 %v287
    %389 = vmatpush2.msra.mxu0 %v286
    %390 = vmatprep.subr.mxu0 %v281
    %391 = vmatpush2.msra.mxu0 %v280
    %392 = vmatprep.subr.mxu0 %v275
    %393 = vmatpush2.msra.mxu0 %v274
    %394 = vmatprep.subr.mxu0 %v269
    %395 = vmatpush2.msra.mxu0 %v268
    %396 = vmatprep.subr.mxu0 %v263
    %397 = vmatpush2.msra.mxu0 %v262
    %398 = vmatprep.subr.mxu0 %v257
    %399 = vmatpush2.msra.mxu0 %v256
    %400 = vmatprep.subr.mxu0 %v251
    %401 = vmatpush2.msra.mxu0 %v250
    %402 = vmatprep.subr.mxu0 %v245
    %403 = vmatpush2.msra.mxu0 %v244
    %404 = vmatprep.mubr.f32.mxu0 %v139
    %405 = vmatmul.mubr.f32.gmra.mxu0 %v138
    %v406 = vpop.f32.mrf.mxu0
    %v407 = vadd.f32 0.0, %v406
    %v408 = vpop.f32.mrf.mxu0
    %v409 = vadd.f32 0.0, %v408
    %410 = vmatprep.mubr.f32.mxu0 %v141
    %411 = vmatmul.mubr.f32.gmra.mxu0 %v140
    %v412 = vpop.f32.mrf.mxu0
    %v413 = vadd.f32 0.0, %v412
    %v414 = vpop.f32.mrf.mxu0
    %v415 = vadd.f32 0.0, %v414
    %416 = vmatprep.mubr.f32.mxu0 %v143
    %417 = vmatmul.mubr.f32.gmra.mxu0 %v142
    %v418 = vpop.f32.mrf.mxu0
    %v419 = vadd.f32 0.0, %v418
    %v420 = vpop.f32.mrf.mxu0
    %v421 = vadd.f32 0.0, %v420
    %422 = vmatprep.mubr.f32.mxu0 %v145
    %423 = vmatmul.mubr.f32.gmra.mxu0 %v144
    %v424 = vpop.f32.mrf.mxu0
    %v425 = vadd.f32 0.0, %v424
    %v426 = vpop.f32.mrf.mxu0
    %v427 = vadd.f32 0.0, %v426
    %428 = vdwg.mxu0
    %429 = vmatprep.subr.mxu0 %v241
    %430 = vmatpush1.msra.mxu0 %v240
    %431 = vmatprep.subr.mxu0 %v235
    %432 = vmatpush1.msra.mxu0 %v234
    %433 = vmatprep.subr.mxu0 %v229
    %434 = vmatpush1.msra.mxu0 %v228
    %435 = vmatprep.subr.mxu0 %v223
    %436 = vmatpush1.msra.mxu0 %v222
    %437 = vmatprep.subr.mxu0 %v217
    %438 = vmatpush1.msra.mxu0 %v216
    %439 = vmatprep.subr.mxu0 %v211
    %440 = vmatpush1.msra.mxu0 %v210
    %441 = vmatprep.subr.mxu0 %v205
    %442 = vmatpush1.msra.mxu0 %v204
    %443 = vmatprep.subr.mxu0 %v199
    %444 = vmatpush1.msra.mxu0 %v198
    %445 = vmatprep.subr.mxu0 %v193
    %446 = vmatpush1.msra.mxu0 %v192
    %447 = vmatprep.subr.mxu0 %v187
    %448 = vmatpush1.msra.mxu0 %v186
    %449 = vmatprep.subr.mxu0 %v181
    %450 = vmatpush1.msra.mxu0 %v180
    %451 = vmatprep.subr.mxu0 %v175
    %452 = vmatpush1.msra.mxu0 %v174
    %453 = vmatprep.subr.mxu0 %v169
    %454 = vmatpush1.msra.mxu0 %v168
    %455 = vmatprep.subr.mxu0 %v163
    %456 = vmatpush1.msra.mxu0 %v162
    %457 = vmatprep.subr.mxu0 %v157
    %458 = vmatpush1.msra.mxu0 %v156
    %459 = vmatprep.subr.mxu0 %v151
    %460 = vmatpush1.msra.mxu0 %v150
    %461 = vmatprep.subr.mxu0 %v337
    %462 = vmatpush2.msra.mxu0 %v336
    %463 = vmatprep.subr.mxu0 %v331
    %464 = vmatpush2.msra.mxu0 %v330
    %465 = vmatprep.subr.mxu0 %v325
    %466 = vmatpush2.msra.mxu0 %v324
    %467 = vmatprep.subr.mxu0 %v319
    %468 = vmatpush2.msra.mxu0 %v318
    %469 = vmatprep.subr.mxu0 %v313
    %470 = vmatpush2.msra.mxu0 %v312
    %471 = vmatprep.subr.mxu0 %v307
    %472 = vmatpush2.msra.mxu0 %v306
    %473 = vmatprep.subr.mxu0 %v301
    %474 = vmatpush2.msra.mxu0 %v300
    %475 = vmatprep.subr.mxu0 %v295
    %476 = vmatpush2.msra.mxu0 %v294
    %477 = vmatprep.subr.mxu0 %v289
    %478 = vmatpush2.msra.mxu0 %v288
    %479 = vmatprep.subr.mxu0 %v283
    %480 = vmatpush2.msra.mxu0 %v282
    %481 = vmatprep.subr.mxu0 %v277
    %482 = vmatpush2.msra.mxu0 %v276
    %483 = vmatprep.subr.mxu0 %v271
    %484 = vmatpush2.msra.mxu0 %v270
    %485 = vmatprep.subr.mxu0 %v265
    %486 = vmatpush2.msra.mxu0 %v264
    %487 = vmatprep.subr.mxu0 %v259
    %488 = vmatpush2.msra.mxu0 %v258
    %489 = vmatprep.subr.mxu0 %v253
    %490 = vmatpush2.msra.mxu0 %v252
    %491 = vmatprep.subr.mxu0 %v247
    %492 = vmatpush2.msra.mxu0 %v246
    %493 = vmatprep.mubr.f32.mxu0 %v139
    %494 = vmatmul.mubr.f32.gmra.mxu0 %v138
    %v495 = vpop.f32.mrf.mxu0
    %v496 = vadd.f32 0.0, %v495
    %v497 = vpop.f32.mrf.mxu0
    %v498 = vadd.f32 0.0, %v497
    %499 = vmatprep.mubr.f32.mxu0 %v141
    %500 = vmatmul.mubr.f32.gmra.mxu0 %v140
    %v501 = vpop.f32.mrf.mxu0
    %v502 = vadd.f32 0.0, %v501
    %v503 = vpop.f32.mrf.mxu0
    %v504 = vadd.f32 0.0, %v503
    %505 = vmatprep.mubr.f32.mxu0 %v143
    %506 = vmatmul.mubr.f32.gmra.mxu0 %v142
    %v507 = vpop.f32.mrf.mxu0
    %v508 = vadd.f32 0.0, %v507
    %v509 = vpop.f32.mrf.mxu0
    %v510 = vadd.f32 0.0, %v509
    %511 = vmatprep.mubr.f32.mxu0 %v145
    %512 = vmatmul.mubr.f32.gmra.mxu0 %v144
    %v513 = vpop.f32.mrf.mxu0
    %v514 = vadd.f32 0.0, %v513
    %v515 = vpop.f32.mrf.mxu0
    %v516 = vadd.f32 0.0, %v515
    %517 = vdwg.mxu0
    %518 = vmatprep.subr.mxu0 %v243
    %519 = vmatpush1.msra.mxu0 %v242
    %520 = vmatprep.subr.mxu0 %v237
    %521 = vmatpush1.msra.mxu0 %v236
    %522 = vmatprep.subr.mxu0 %v231
    %523 = vmatpush1.msra.mxu0 %v230
    %524 = vmatprep.subr.mxu0 %v225
    %525 = vmatpush1.msra.mxu0 %v224
    %526 = vmatprep.subr.mxu0 %v219
    %527 = vmatpush1.msra.mxu0 %v218
    %528 = vmatprep.subr.mxu0 %v213
    %529 = vmatpush1.msra.mxu0 %v212
    %530 = vmatprep.subr.mxu0 %v207
    %531 = vmatpush1.msra.mxu0 %v206
    %532 = vmatprep.subr.mxu0 %v201
    %533 = vmatpush1.msra.mxu0 %v200
    %534 = vmatprep.subr.mxu0 %v195
    %535 = vmatpush1.msra.mxu0 %v194
    %536 = vmatprep.subr.mxu0 %v189
    %537 = vmatpush1.msra.mxu0 %v188
    %538 = vmatprep.subr.mxu0 %v183
    %539 = vmatpush1.msra.mxu0 %v182
    %540 = vmatprep.subr.mxu0 %v177
    %541 = vmatpush1.msra.mxu0 %v176
    %542 = vmatprep.subr.mxu0 %v171
    %543 = vmatpush1.msra.mxu0 %v170
    %544 = vmatprep.subr.mxu0 %v165
    %545 = vmatpush1.msra.mxu0 %v164
    %546 = vmatprep.subr.mxu0 %v159
    %547 = vmatpush1.msra.mxu0 %v158
    %548 = vmatprep.subr.mxu0 %v153
    %549 = vmatpush1.msra.mxu0 %v152
    %550 = vmatprep.subr.mxu0 %v339
    %551 = vmatpush2.msra.mxu0 %v338
    %552 = vmatprep.subr.mxu0 %v333
    %553 = vmatpush2.msra.mxu0 %v332
    %554 = vmatprep.subr.mxu0 %v327
    %555 = vmatpush2.msra.mxu0 %v326
    %556 = vmatprep.subr.mxu0 %v321
    %557 = vmatpush2.msra.mxu0 %v320
    %558 = vmatprep.subr.mxu0 %v315
    %559 = vmatpush2.msra.mxu0 %v314
    %560 = vmatprep.subr.mxu0 %v309
    %561 = vmatpush2.msra.mxu0 %v308
    %562 = vmatprep.subr.mxu0 %v303
    %563 = vmatpush2.msra.mxu0 %v302
    %564 = vmatprep.subr.mxu0 %v297
    %565 = vmatpush2.msra.mxu0 %v296
    %566 = vmatprep.subr.mxu0 %v291
    %567 = vmatpush2.msra.mxu0 %v290
    %568 = vmatprep.subr.mxu0 %v285
    %569 = vmatpush2.msra.mxu0 %v284
    %570 = vmatprep.subr.mxu0 %v279
    %571 = vmatpush2.msra.mxu0 %v278
    %572 = vmatprep.subr.mxu0 %v273
    %573 = vmatpush2.msra.mxu0 %v272
    %574 = vmatprep.subr.mxu0 %v267
    %575 = vmatpush2.msra.mxu0 %v266
    %576 = vmatprep.subr.mxu0 %v261
    %577 = vmatpush2.msra.mxu0 %v260
    %578 = vmatprep.subr.mxu0 %v255
    %579 = vmatpush2.msra.mxu0 %v254
    %580 = vmatprep.subr.mxu0 %v249
    %581 = vmatpush2.msra.mxu0 %v248
    %582 = vmatprep.mubr.f32.mxu0 %v139
    %583 = vmatmul.mubr.f32.gmra.mxu0 %v138
    %v584 = vpop.f32.mrf.mxu0
    %v585 = vadd.f32 0.0, %v584
    %v586 = vpop.f32.mrf.mxu0
    %v587 = vadd.f32 0.0, %v586
    %588 = vmatprep.mubr.f32.mxu0 %v141
    %589 = vmatmul.mubr.f32.gmra.mxu0 %v140
    %v590 = vpop.f32.mrf.mxu0
    %v591 = vadd.f32 0.0, %v590
    %v592 = vpop.f32.mrf.mxu0
    %v593 = vadd.f32 0.0, %v592
    %594 = vmatprep.mubr.f32.mxu0 %v143
    %595 = vmatmul.mubr.f32.gmra.mxu0 %v142
    %v596 = vpop.f32.mrf.mxu0
    %v597 = vadd.f32 0.0, %v596
    %v598 = vpop.f32.mrf.mxu0
    %v599 = vadd.f32 0.0, %v598
    %600 = vmatprep.mubr.f32.mxu0 %v145
    %601 = vmatmul.mubr.f32.gmra.mxu0 %v144
    %v602 = vpop.f32.mrf.mxu0
    %v603 = vadd.f32 0.0, %v602
    %v604 = vpop.f32.mrf.mxu0
    %v605 = vadd.f32 0.0, %v604
    %606 = vdwg.mxu0
    %v607 = vrot.slane %v407, 7
    %v608 = vrot.slane %v409, 7
    %v609 = vrot.slane %v413, 7
    %v610 = vrot.slane %v415, 7
    %v611 = vrot.slane %v419, 7
    %v612 = vrot.slane %v421, 7
    %v613 = vrot.slane %v425, 7
    %v614 = vrot.slane %v427, 7
    %vm615 = vcmp.lt.s32.totalorder %v62, 1
    %v616 = vsel %vm615, %v611, %v613
    %v617 = vsel %vm615, %v612, %v614
    %v618 = vsel %vm615, %v609, %v611
    %v619 = vsel %vm615, %v610, %v612
    %v620 = vsel %vm615, %v607, %v609
    %v621 = vsel %vm615, %v608, %v610
    %v622 = vsel %vm615, %v613, %v607
    %v623 = vsel %vm615, %v614, %v608
    %v624 = vrot.slane %v585, 1
    %v625 = vrot.slane %v587, 1
    %v626 = vrot.slane %v591, 1
    %v627 = vrot.slane %v593, 1
    %v628 = vrot.slane %v597, 1
    %v629 = vrot.slane %v599, 1
    %v630 = vrot.slane %v603, 1
    %v631 = vrot.slane %v605, 1
    %vm632 = vcmp.lt.s32.totalorder %v62, 7
    %v633 = vsel %vm632, %v628, %v630
    %v634 = vsel %vm632, %v629, %v631
    %v635 = vsel %vm632, %v626, %v628
    %v636 = vsel %vm632, %v627, %v629
    %v637 = vsel %vm632, %v624, %v626
    %v638 = vsel %vm632, %v625, %v627
    %v639 = vsel %vm632, %v630, %v624
    %v640 = vsel %vm632, %v631, %v625
    %v641 = vmul.f32 %v122, %v622
    %v642 = vmul.f32 %v122, %v623
    %v643 = vmul.f32 %v123, %v620
    %v644 = vmul.f32 %v123, %v621
    %v645 = vmul.f32 %v124, %v618
    %v646 = vmul.f32 %v124, %v619
    %v647 = vmul.f32 %v125, %v616
    %v648 = vmul.f32 %v125, %v617
    %v649 = vadd.f32 %v496, %v641
    %v650 = vadd.f32 %v498, %v642
    %v651 = vadd.f32 %v502, %v643
    %v652 = vadd.f32 %v504, %v644
    %v653 = vadd.f32 %v508, %v645
    %v654 = vadd.f32 %v510, %v646
    %v655 = vadd.f32 %v514, %v647
    %v656 = vadd.f32 %v516, %v648
    %v657 = vmul.f32 %v134, %v637
    %v658 = vmul.f32 %v134, %v638
    %v659 = vmul.f32 %v135, %v635
    %v660 = vmul.f32 %v135, %v636
    %v661 = vmul.f32 %v136, %v633
    %v662 = vmul.f32 %v136, %v634
    %v663 = vmul.f32 %v137, %v639
    %v664 = vmul.f32 %v137, %v640
    %v665 = vadd.f32 %v649, %v657
    %v666 = vadd.f32 %v650, %v658
    %v667 = vadd.f32 %v651, %v659
    %v668 = vadd.f32 %v652, %v660
    %v669 = vadd.f32 %v653, %v661
    %v670 = vadd.f32 %v654, %v662
    %v671 = vadd.f32 %v655, %v663
    %v672 = vadd.f32 %v656, %v664
    %v673 = vadd.f32 %v665, %v667
    %v674 = vadd.f32 %v673, %v669
    %v675 = vadd.f32 %v674, %v671
    %v676 = vrot.slane %v675, 4
    %v677 = vadd.f32 %v675, %v676
    %v678 = vrot.slane %v677, 2
    %v679 = vadd.f32 %v677, %v678
    %v680 = vrot.slane %v679, 1
    %v681 = vadd.f32 %v679, %v680
    %v682 = vadd.f32 %v666, %v668
    %v683 = vadd.f32 %v682, %v670
    %v684 = vadd.f32 %v683, %v672
    %v685 = vrot.slane %v684, 4
    %v686 = vadd.f32 %v684, %v685
    %v687 = vrot.slane %v686, 2
    %v688 = vadd.f32 %v686, %v687
    %v689 = vrot.slane %v688, 1
    %v690 = vadd.f32 %v688, %v689
    %v691 = vmul.f32 %v665, %v665
    %v692 = vmul.f32 %v666, %v666
    %v693 = vmul.f32 %v667, %v667
    %v694 = vmul.f32 %v668, %v668
    %v695 = vmul.f32 %v669, %v669
    %v696 = vmul.f32 %v670, %v670
    %v697 = vmul.f32 %v671, %v671
    %v698 = vmul.f32 %v672, %v672
    %v699 = vadd.f32 %v691, %v693
    %v700 = vadd.f32 %v699, %v695
    %v701 = vadd.f32 %v700, %v697
    %v702 = vrot.slane %v701, 4
    %v703 = vadd.f32 %v701, %v702
    %v704 = vrot.slane %v703, 2
    %v705 = vadd.f32 %v703, %v704
    %v706 = vrot.slane %v705, 1
    %v707 = vadd.f32 %v705, %v706
    %v708 = vadd.f32 %v692, %v694
    %v709 = vadd.f32 %v708, %v696
    %v710 = vadd.f32 %v709, %v698
    %v711 = vrot.slane %v710, 4
    %v712 = vadd.f32 %v710, %v711
    %v713 = vrot.slane %v712, 2
    %v714 = vadd.f32 %v712, %v713
    %v715 = vrot.slane %v714, 1
    %v716 = vadd.f32 %v714, %v715
    %vm717 = vcmask 1040384
    %v718 = vsel %vm717, %v681, %v707
    %v719 = vsel %vm717, %v690, %v716
    %v720 = vld [vmem:[%s7] sm:$0xff]
    %v721 = vld [vmem:[%s7 + $0x8] sm:$0xff]
    %v722 = vld [vmem:[%s7 + $0x10] sm:$0xff]
    %v723 = vld [vmem:[%s7 + $0x18] sm:$0xff]
    %v724 = vld [vmem:[%s7 + $0x20] sm:$0xff]
    %v725 = vld [vmem:[%s7 + $0x28] sm:$0xff]
    %v726 = vld [vmem:[%s7 + $0x30] sm:$0xff]
    %v727 = vld [vmem:[%s7 + $0x38] sm:$0xff]
    %v728 = vld [vmem:[%s7 + $0x40] sm:$0xff]
    %v729 = vld [vmem:[%s7 + $0x48] sm:$0xff]
    %v730 = vld [vmem:[%s7 + $0x50] sm:$0xff]
    %v731 = vld [vmem:[%s7 + $0x58] sm:$0xff]
    %v732 = vld [vmem:[%s7 + $0x60] sm:$0xff]
    %v733 = vld [vmem:[%s7 + $0x68] sm:$0xff]
    %v734 = vld [vmem:[%s7 + $0x70] sm:$0xff]
    %v735 = vld [vmem:[%s7 + $0x78] sm:$0xff]
    %v736 = vld [vmem:[%s7 + $0x80] sm:$0xff]
    %v737 = vld [vmem:[%s7 + $0x88] sm:$0xff]
    %v738 = vld [vmem:[%s7 + $0x90] sm:$0xff]
    %v739 = vld [vmem:[%s7 + $0x98] sm:$0xff]
    %v740 = vld [vmem:[%s7 + $0xa0] sm:$0xff]
    %v741 = vld [vmem:[%s7 + $0xa8] sm:$0xff]
    %v742 = vld [vmem:[%s7 + $0xb0] sm:$0xff]
    %v743 = vld [vmem:[%s7 + $0xb8] sm:$0xff]
    %v744 = vld [vmem:[%s7 + $0xc0] sm:$0xff]
    %v745 = vld [vmem:[%s7 + $0xc8] sm:$0xff]
    %v746 = vld [vmem:[%s7 + $0xd0] sm:$0xff]
    %v747 = vld [vmem:[%s7 + $0xd8] sm:$0xff]
    %v748 = vld [vmem:[%s7 + $0xe0] sm:$0xff]
    %v749 = vld [vmem:[%s7 + $0xe8] sm:$0xff]
    %v750 = vld [vmem:[%s7 + $0xf0] sm:$0xff]
    %v751 = vld [vmem:[%s7 + $0xf8] sm:$0xff]
    %752 = vmatprep.subr.mxu0 0.0
    %753 = vmatpush1.msra.mxu0 %v735
    %754 = vmatprep.subr.mxu0 0.0
    %755 = vmatpush1.msra.mxu0 %v734
    %756 = vmatprep.subr.mxu0 0.0
    %757 = vmatpush1.msra.mxu0 %v733
    %758 = vmatprep.subr.mxu0 0.0
    %759 = vmatpush1.msra.mxu0 %v732
    %760 = vmatprep.subr.mxu0 0.0
    %761 = vmatpush1.msra.mxu0 %v731
    %762 = vmatprep.subr.mxu0 0.0
    %763 = vmatpush1.msra.mxu0 %v730
    %764 = vmatprep.subr.mxu0 0.0
    %765 = vmatpush1.msra.mxu0 %v729
    %766 = vmatprep.subr.mxu0 0.0
    %767 = vmatpush1.msra.mxu0 %v728
    %768 = vmatprep.subr.mxu0 0.0
    %769 = vmatpush1.msra.mxu0 %v727
    %770 = vmatprep.subr.mxu0 0.0
    %771 = vmatpush1.msra.mxu0 %v726
    %772 = vmatprep.subr.mxu0 0.0
    %773 = vmatpush1.msra.mxu0 %v725
    %774 = vmatprep.subr.mxu0 0.0
    %775 = vmatpush1.msra.mxu0 %v724
    %776 = vmatprep.subr.mxu0 0.0
    %777 = vmatpush1.msra.mxu0 %v723
    %778 = vmatprep.subr.mxu0 0.0
    %779 = vmatpush1.msra.mxu0 %v722
    %780 = vmatprep.subr.mxu0 0.0
    %781 = vmatpush1.msra.mxu0 %v721
    %782 = vmatprep.subr.mxu0 0.0
    %783 = vmatpush1.msra.mxu0 %v720
    %784 = vmatprep.subr.mxu0 0.0
    %785 = vmatpush2.msra.mxu0 %v751
    %786 = vmatprep.subr.mxu0 0.0
    %787 = vmatpush2.msra.mxu0 %v750
    %788 = vmatprep.subr.mxu0 0.0
    %789 = vmatpush2.msra.mxu0 %v749
    %790 = vmatprep.subr.mxu0 0.0
    %791 = vmatpush2.msra.mxu0 %v748
    %792 = vmatprep.subr.mxu0 0.0
    %793 = vmatpush2.msra.mxu0 %v747
    %794 = vmatprep.subr.mxu0 0.0
    %795 = vmatpush2.msra.mxu0 %v746
    %796 = vmatprep.subr.mxu0 0.0
    %797 = vmatpush2.msra.mxu0 %v745
    %798 = vmatprep.subr.mxu0 0.0
    %799 = vmatpush2.msra.mxu0 %v744
    %800 = vmatprep.subr.mxu0 0.0
    %801 = vmatpush2.msra.mxu0 %v743
    %802 = vmatprep.subr.mxu0 0.0
    %803 = vmatpush2.msra.mxu0 %v742
    %804 = vmatprep.subr.mxu0 0.0
    %805 = vmatpush2.msra.mxu0 %v741
    %806 = vmatprep.subr.mxu0 0.0
    %807 = vmatpush2.msra.mxu0 %v740
    %808 = vmatprep.subr.mxu0 0.0
    %809 = vmatpush2.msra.mxu0 %v739
    %810 = vmatprep.subr.mxu0 0.0
    %811 = vmatpush2.msra.mxu0 %v738
    %812 = vmatprep.subr.mxu0 0.0
    %813 = vmatpush2.msra.mxu0 %v737
    %814 = vmatprep.subr.mxu0 0.0
    %815 = vmatpush2.msra.mxu0 %v736
    %816 = vmatprep.mubr.f32.mxu0 %v719
    %817 = vmatmul.mubr.f32.gmra.mxu0 %v718
    %v818 = vpop.f32.mrf.mxu0
    %v819 = vadd.f32 0.0, %v818
    %v820 = vpop.f32.mrf.mxu0
    %821 = vdwg.mxu0
    %v822 = vmul.f32 %v819, 0.001953125
    %v823 = vmul.f32 %v822, %v822
    %v825 = vrot.slane %v823, 7
    %v827 = vsub.f32 %v822, %v825
    %v828 = vadd.f32 %v827, 1e-05
    %v829 = vrsqrt.pop %v828
    %v832 = vunpack.c.l.s4 1966171168
    %v833 = vunpack.c.0.s8 %v832
    %v834 = vlaneseq
    %v835 = vshrl.u32 %v834, 7
    %v836 = vsub.s32 %v833, %v835
    %v837 = vrot.slane %v829, %v836
    %v838 = vcombine.high %v837, %v837
    %v840 = vunpack.c.l.s4 1966171168
    %v841 = vunpack.c.0.s8 %v840
    %v842 = vlaneseq
    %v843 = vshrl.u32 %v842, 7
    %v844 = vsub.s32 %v841, %v843
    %v845 = vrot.slane %v838, %v844
    %v847 = vmul.f32 %v146, %v845
    %v848 = vmul.f32 %v822, %v847
    %v849 = vsub.f32 %v147, %v848
    %v851 = vlaneseq
    %v852 = vshrl.u32 %v851, 7
    %v853 = vsub.s32 0, %v852
    %v854 = vrot.slane %v849, %v853
    %v856 = vsel %vm717, %v847, %v854
    %v857 = vld [vmem:[%s8] sm:$0xff]
    %v858 = vld [vmem:[%s8 + $0x8] sm:$0xff]
    %v859 = vld [vmem:[%s8 + $0x10] sm:$0xff]
    %v860 = vld [vmem:[%s8 + $0x18] sm:$0xff]
    %vm861 = vcmask 130048
    %v863 = vsel %vm861, %v856, 0
    %865 = vmatprep.subr.mxu0 0.0
    %866 = vmatpush1.msra.mxu0 0.0
    %867 = vmatprep.subr.mxu0 0.0
    %868 = vmatpush1.msra.mxu0 0.0
    %869 = vmatprep.subr.mxu0 0.0
    %870 = vmatpush1.msra.mxu0 0.0
    %871 = vmatprep.subr.mxu0 0.0
    %872 = vmatpush1.msra.mxu0 0.0
    %873 = vmatprep.subr.mxu0 0.0
    %874 = vmatpush1.msra.mxu0 0.0
    %875 = vmatprep.subr.mxu0 0.0
    %876 = vmatpush1.msra.mxu0 0.0
    %877 = vmatprep.subr.mxu0 0.0
    %878 = vmatpush1.msra.mxu0 0.0
    %879 = vmatprep.subr.mxu0 0.0
    %880 = vmatpush1.msra.mxu0 0.0
    %881 = vmatprep.subr.mxu0 0.0
    %882 = vmatpush1.msra.mxu0 0.0
    %883 = vmatprep.subr.mxu0 0.0
    %884 = vmatpush1.msra.mxu0 0.0
    %885 = vmatprep.subr.mxu0 0.0
    %886 = vmatpush1.msra.mxu0 0.0
    %887 = vmatprep.subr.mxu0 0.0
    %888 = vmatpush1.msra.mxu0 0.0
    %889 = vmatprep.subr.mxu0 0.0
    %890 = vmatpush1.msra.mxu0 0.0
    %891 = vmatprep.subr.mxu0 0.0
    %892 = vmatpush1.msra.mxu0 0.0
    %893 = vmatprep.subr.mxu0 %v860
    %894 = vmatpush1.msra.mxu0 %v859
    %895 = vmatprep.subr.mxu0 %v858
    %896 = vmatpush1.msra.mxu0 %v857
    %897 = vmatprep.subr.mxu0 0.0
    %898 = vmatpush2.msra.mxu0 0.0
    %899 = vmatprep.subr.mxu0 0.0
    %900 = vmatpush2.msra.mxu0 0.0
    %901 = vmatprep.subr.mxu0 0.0
    %902 = vmatpush2.msra.mxu0 0.0
    %903 = vmatprep.subr.mxu0 0.0
    %904 = vmatpush2.msra.mxu0 0.0
    %905 = vmatprep.subr.mxu0 0.0
    %906 = vmatpush2.msra.mxu0 0.0
    %907 = vmatprep.subr.mxu0 0.0
    %908 = vmatpush2.msra.mxu0 0.0
    %909 = vmatprep.subr.mxu0 0.0
    %910 = vmatpush2.msra.mxu0 0.0
    %911 = vmatprep.subr.mxu0 0.0
    %912 = vmatpush2.msra.mxu0 0.0
    %913 = vmatprep.subr.mxu0 0.0
    %914 = vmatpush2.msra.mxu0 0.0
    %915 = vmatprep.subr.mxu0 0.0
    %916 = vmatpush2.msra.mxu0 0.0
    %917 = vmatprep.subr.mxu0 0.0
    %918 = vmatpush2.msra.mxu0 0.0
    %919 = vmatprep.subr.mxu0 0.0
    %920 = vmatpush2.msra.mxu0 0.0
    %921 = vmatprep.subr.mxu0 0.0
    %922 = vmatpush2.msra.mxu0 0.0
    %923 = vmatprep.subr.mxu0 0.0
    %924 = vmatpush2.msra.mxu0 0.0
    %925 = vmatprep.subr.mxu0 0.0
    %926 = vmatpush2.msra.mxu0 0.0
    %927 = vmatprep.subr.mxu0 0.0
    %928 = vmatpush2.msra.mxu0 0.0
    %929 = vmatprep.mubr.f32.mxu0 0.0
    %930 = vmatmul.mubr.f32.gmra.mxu0 %v863
    %v931 = vpop.f32.mrf.mxu0
    %v932 = vadd.f32 0.0, %v931
    %v933 = vpop.f32.mrf.mxu0
    %v934 = vadd.f32 0.0, %v933
    %935 = vdwg.mxu0
    %v936 = vlaneseq
    %v937 = vshrl.u32 %v936, 7
    %v938 = vsub.s32 0, %v937
    %v939 = vrot.slane %v932, %v938
    %v940 = vlaneseq
    %v941 = vshrl.u32 %v940, 7
    %v942 = vsub.s32 0, %v941
    %v943 = vrot.slane %v934, %v942
    %v944 = vmul.f32 %v665, %v939
    %v945 = vmul.f32 %v666, %v943
    %v946 = vmul.f32 %v667, %v939
    %v947 = vmul.f32 %v668, %v943
    %v948 = vmul.f32 %v669, %v939
    %v949 = vmul.f32 %v670, %v943
    %v950 = vmul.f32 %v671, %v939
    %v951 = vmul.f32 %v672, %v943
    %v952 = vlaneseq
    %v953 = vshrl.u32 %v952, 7
    %v954 = vsub.s32 1, %v953
    %v955 = vrot.slane %v932, %v954
    %v956 = vlaneseq
    %v957 = vshrl.u32 %v956, 7
    %v958 = vsub.s32 1, %v957
    %v959 = vrot.slane %v934, %v958
    %v960 = vadd.f32 %v944, %v955
    %v961 = vadd.f32 %v945, %v959
    %v962 = vadd.f32 %v946, %v955
    %v963 = vadd.f32 %v947, %v959
    %v964 = vadd.f32 %v948, %v955
    %v965 = vadd.f32 %v949, %v959
    %v966 = vadd.f32 %v950, %v955
    %v967 = vadd.f32 %v951, %v959
    %v968 = vmax.f32 %v960, 0.0
    %v969 = vmax.f32 %v961, 0.0
    %v970 = vmax.f32 %v962, 0.0
    %v971 = vmax.f32 %v963, 0.0
    %v972 = vmax.f32 %v964, 0.0
    %v973 = vmax.f32 %v965, 0.0
    %v974 = vmax.f32 %v966, 0.0
    %v975 = vmax.f32 %v967, 0.0
    %v976 = vld [vmem:[%s5] sm:$0x1]
    %v977 = vld [vmem:[%s6] sm:$0x1]
    %v978 = vld [vmem:[#allocation5] sm:$0xff]
    %v979 = vld [vmem:[#allocation5 + $0x8] sm:$0xff]
    %v980 = vld [vmem:[#allocation5 + $0x10] sm:$0xff]
    %v981 = vld [vmem:[#allocation5 + $0x18] sm:$0xff]
    %v982 = vld [vmem:[#allocation5 + $0x20] sm:$0xff]
    %v983 = vld [vmem:[#allocation5 + $0x28] sm:$0xff]
    %v984 = vld [vmem:[#allocation5 + $0x30] sm:$0xff]
    %v985 = vld [vmem:[#allocation5 + $0x38] sm:$0xff]
    %v986 = vld [vmem:[#allocation5 + $0x40] sm:$0xff]
    %v987 = vld [vmem:[#allocation5 + $0x48] sm:$0xff]
    %v988 = vld [vmem:[#allocation5 + $0x50] sm:$0xff]
    %v989 = vld [vmem:[#allocation5 + $0x58] sm:$0xff]
    %v990 = vld [vmem:[#allocation5 + $0x60] sm:$0xff]
    %v991 = vld [vmem:[#allocation5 + $0x68] sm:$0xff]
    %v992 = vld [vmem:[#allocation5 + $0x70] sm:$0xff]
    %v993 = vld [vmem:[#allocation5 + $0x78] sm:$0xff]
    %v994 = vld [vmem:[#allocation5 + $0x80] sm:$0xff]
    %v995 = vld [vmem:[#allocation5 + $0x88] sm:$0xff]
    %v996 = vld [vmem:[#allocation5 + $0x90] sm:$0xff]
    %v997 = vld [vmem:[#allocation5 + $0x98] sm:$0xff]
    %v998 = vld [vmem:[#allocation5 + $0xa0] sm:$0xff]
    %v999 = vld [vmem:[#allocation5 + $0xa8] sm:$0xff]
    %v1000 = vld [vmem:[#allocation5 + $0xb0] sm:$0xff]
    %v1001 = vld [vmem:[#allocation5 + $0xb8] sm:$0xff]
    %v1002 = vld [vmem:[#allocation5 + $0xc0] sm:$0xff]
    %v1003 = vld [vmem:[#allocation5 + $0xc8] sm:$0xff]
    %v1004 = vld [vmem:[#allocation5 + $0xd0] sm:$0xff]
    %v1005 = vld [vmem:[#allocation5 + $0xd8] sm:$0xff]
    %v1006 = vld [vmem:[#allocation5 + $0xe0] sm:$0xff]
    %v1007 = vld [vmem:[#allocation5 + $0xe8] sm:$0xff]
    %v1008 = vld [vmem:[#allocation5 + $0xf0] sm:$0xff]
    %v1009 = vld [vmem:[#allocation5 + $0xf8] sm:$0xff]
    %v1010 = vld [vmem:[#allocation5 + $0x100] sm:$0xff]
    %v1011 = vld [vmem:[#allocation5 + $0x108] sm:$0xff]
    %v1012 = vld [vmem:[#allocation5 + $0x110] sm:$0xff]
    %v1013 = vld [vmem:[#allocation5 + $0x118] sm:$0xff]
    %v1014 = vld [vmem:[#allocation5 + $0x120] sm:$0xff]
    %v1015 = vld [vmem:[#allocation5 + $0x128] sm:$0xff]
    %v1016 = vld [vmem:[#allocation5 + $0x130] sm:$0xff]
    %v1017 = vld [vmem:[#allocation5 + $0x138] sm:$0xff]
    %v1018 = vld [vmem:[#allocation5 + $0x140] sm:$0xff]
    %v1019 = vld [vmem:[#allocation5 + $0x148] sm:$0xff]
    %v1020 = vld [vmem:[#allocation5 + $0x150] sm:$0xff]
    %v1021 = vld [vmem:[#allocation5 + $0x158] sm:$0xff]
    %v1022 = vld [vmem:[#allocation5 + $0x160] sm:$0xff]
    %v1023 = vld [vmem:[#allocation5 + $0x168] sm:$0xff]
    %v1024 = vld [vmem:[#allocation5 + $0x170] sm:$0xff]
    %v1025 = vld [vmem:[#allocation5 + $0x178] sm:$0xff]
    %v1026 = vld [vmem:[#allocation5 + $0x180] sm:$0xff]
    %v1027 = vld [vmem:[#allocation5 + $0x188] sm:$0xff]
    %v1028 = vld [vmem:[#allocation5 + $0x190] sm:$0xff]
    %v1029 = vld [vmem:[#allocation5 + $0x198] sm:$0xff]
    %v1030 = vld [vmem:[#allocation5 + $0x1a0] sm:$0xff]
    %v1031 = vld [vmem:[#allocation5 + $0x1a8] sm:$0xff]
    %v1032 = vld [vmem:[#allocation5 + $0x1b0] sm:$0xff]
    %v1033 = vld [vmem:[#allocation5 + $0x1b8] sm:$0xff]
    %v1034 = vld [vmem:[#allocation5 + $0x1c0] sm:$0xff]
    %v1035 = vld [vmem:[#allocation5 + $0x1c8] sm:$0xff]
    %v1036 = vld [vmem:[#allocation5 + $0x1d0] sm:$0xff]
    %v1037 = vld [vmem:[#allocation5 + $0x1d8] sm:$0xff]
    %v1038 = vld [vmem:[#allocation5 + $0x1e0] sm:$0xff]
    %v1039 = vld [vmem:[#allocation5 + $0x1e8] sm:$0xff]
    %v1040 = vld [vmem:[#allocation5 + $0x1f0] sm:$0xff]
    %v1041 = vld [vmem:[#allocation5 + $0x1f8] sm:$0xff]
    %v1042 = vld [vmem:[#allocation5 + $0x200] sm:$0xff]
    %v1043 = vld [vmem:[#allocation5 + $0x208] sm:$0xff]
    %v1044 = vld [vmem:[#allocation5 + $0x210] sm:$0xff]
    %v1045 = vld [vmem:[#allocation5 + $0x218] sm:$0xff]
    %v1046 = vld [vmem:[#allocation5 + $0x220] sm:$0xff]
    %v1047 = vld [vmem:[#allocation5 + $0x228] sm:$0xff]
    %v1048 = vld [vmem:[#allocation5 + $0x230] sm:$0xff]
    %v1049 = vld [vmem:[#allocation5 + $0x238] sm:$0xff]
    %v1050 = vld [vmem:[#allocation5 + $0x240] sm:$0xff]
    %v1051 = vld [vmem:[#allocation5 + $0x248] sm:$0xff]
    %v1052 = vld [vmem:[#allocation5 + $0x250] sm:$0xff]
    %v1053 = vld [vmem:[#allocation5 + $0x258] sm:$0xff]
    %v1054 = vld [vmem:[#allocation5 + $0x260] sm:$0xff]
    %v1055 = vld [vmem:[#allocation5 + $0x268] sm:$0xff]
    %v1056 = vld [vmem:[#allocation5 + $0x270] sm:$0xff]
    %v1057 = vld [vmem:[#allocation5 + $0x278] sm:$0xff]
    %v1058 = vld [vmem:[#allocation5 + $0x280] sm:$0xff]
    %v1059 = vld [vmem:[#allocation5 + $0x288] sm:$0xff]
    %v1060 = vld [vmem:[#allocation5 + $0x290] sm:$0xff]
    %v1061 = vld [vmem:[#allocation5 + $0x298] sm:$0xff]
    %v1062 = vld [vmem:[#allocation5 + $0x2a0] sm:$0xff]
    %v1063 = vld [vmem:[#allocation5 + $0x2a8] sm:$0xff]
    %v1064 = vld [vmem:[#allocation5 + $0x2b0] sm:$0xff]
    %v1065 = vld [vmem:[#allocation5 + $0x2b8] sm:$0xff]
    %v1066 = vld [vmem:[#allocation5 + $0x2c0] sm:$0xff]
    %v1067 = vld [vmem:[#allocation5 + $0x2c8] sm:$0xff]
    %v1068 = vld [vmem:[#allocation5 + $0x2d0] sm:$0xff]
    %v1069 = vld [vmem:[#allocation5 + $0x2d8] sm:$0xff]
    %v1070 = vld [vmem:[#allocation5 + $0x2e0] sm:$0xff]
    %v1071 = vld [vmem:[#allocation5 + $0x2e8] sm:$0xff]
    %v1072 = vld [vmem:[#allocation5 + $0x2f0] sm:$0xff]
    %v1073 = vld [vmem:[#allocation5 + $0x2f8] sm:$0xff]
    %v1074 = vld [vmem:[#allocation5 + $0x300] sm:$0xff]
    %v1075 = vld [vmem:[#allocation5 + $0x308] sm:$0xff]
    %v1076 = vld [vmem:[#allocation5 + $0x310] sm:$0xff]
    %v1077 = vld [vmem:[#allocation5 + $0x318] sm:$0xff]
    %v1078 = vld [vmem:[#allocation5 + $0x320] sm:$0xff]
    %v1079 = vld [vmem:[#allocation5 + $0x328] sm:$0xff]
    %v1080 = vld [vmem:[#allocation5 + $0x330] sm:$0xff]
    %v1081 = vld [vmem:[#allocation5 + $0x338] sm:$0xff]
    %v1082 = vld [vmem:[#allocation5 + $0x340] sm:$0xff]
    %v1083 = vld [vmem:[#allocation5 + $0x348] sm:$0xff]
    %v1084 = vld [vmem:[#allocation5 + $0x350] sm:$0xff]
    %v1085 = vld [vmem:[#allocation5 + $0x358] sm:$0xff]
    %v1086 = vld [vmem:[#allocation5 + $0x360] sm:$0xff]
    %v1087 = vld [vmem:[#allocation5 + $0x368] sm:$0xff]
    %v1088 = vld [vmem:[#allocation5 + $0x370] sm:$0xff]
    %v1089 = vld [vmem:[#allocation5 + $0x378] sm:$0xff]
    %v1090 = vld [vmem:[#allocation5 + $0x380] sm:$0xff]
    %v1091 = vld [vmem:[#allocation5 + $0x388] sm:$0xff]
    %v1092 = vld [vmem:[#allocation5 + $0x390] sm:$0xff]
    %v1093 = vld [vmem:[#allocation5 + $0x398] sm:$0xff]
    %v1094 = vld [vmem:[#allocation5 + $0x3a0] sm:$0xff]
    %v1095 = vld [vmem:[#allocation5 + $0x3a8] sm:$0xff]
    %v1096 = vld [vmem:[#allocation5 + $0x3b0] sm:$0xff]
    %v1097 = vld [vmem:[#allocation5 + $0x3b8] sm:$0xff]
    %v1098 = vld [vmem:[#allocation5 + $0x3c0] sm:$0xff]
    %v1099 = vld [vmem:[#allocation5 + $0x3c8] sm:$0xff]
    %v1100 = vld [vmem:[#allocation5 + $0x3d0] sm:$0xff]
    %v1101 = vld [vmem:[#allocation5 + $0x3d8] sm:$0xff]
    %v1102 = vld [vmem:[#allocation5 + $0x3e0] sm:$0xff]
    %v1103 = vld [vmem:[#allocation5 + $0x3e8] sm:$0xff]
    %v1104 = vld [vmem:[#allocation5 + $0x3f0] sm:$0xff]
    %v1105 = vld [vmem:[#allocation5 + $0x3f8] sm:$0xff]
    %v1106 = vld [vmem:[#allocation5 + $0x400] sm:$0xff]
    %v1107 = vld [vmem:[#allocation5 + $0x408] sm:$0xff]
    %v1108 = vld [vmem:[#allocation5 + $0x410] sm:$0xff]
    %v1109 = vld [vmem:[#allocation5 + $0x418] sm:$0xff]
    %v1110 = vld [vmem:[#allocation5 + $0x420] sm:$0xff]
    %v1111 = vld [vmem:[#allocation5 + $0x428] sm:$0xff]
    %v1112 = vld [vmem:[#allocation5 + $0x430] sm:$0xff]
    %v1113 = vld [vmem:[#allocation5 + $0x438] sm:$0xff]
    %v1114 = vld [vmem:[#allocation5 + $0x440] sm:$0xff]
    %v1115 = vld [vmem:[#allocation5 + $0x448] sm:$0xff]
    %v1116 = vld [vmem:[#allocation5 + $0x450] sm:$0xff]
    %v1117 = vld [vmem:[#allocation5 + $0x458] sm:$0xff]
    %v1118 = vld [vmem:[#allocation5 + $0x460] sm:$0xff]
    %v1119 = vld [vmem:[#allocation5 + $0x468] sm:$0xff]
    %v1120 = vld [vmem:[#allocation5 + $0x470] sm:$0xff]
    %v1121 = vld [vmem:[#allocation5 + $0x478] sm:$0xff]
    %v1122 = vld [vmem:[#allocation5 + $0x480] sm:$0xff]
    %v1123 = vld [vmem:[#allocation5 + $0x488] sm:$0xff]
    %v1124 = vld [vmem:[#allocation5 + $0x490] sm:$0xff]
    %v1125 = vld [vmem:[#allocation5 + $0x498] sm:$0xff]
    %v1126 = vld [vmem:[#allocation5 + $0x4a0] sm:$0xff]
    %v1127 = vld [vmem:[#allocation5 + $0x4a8] sm:$0xff]
    %v1128 = vld [vmem:[#allocation5 + $0x4b0] sm:$0xff]
    %v1129 = vld [vmem:[#allocation5 + $0x4b8] sm:$0xff]
    %v1130 = vld [vmem:[#allocation5 + $0x4c0] sm:$0xff]
    %v1131 = vld [vmem:[#allocation5 + $0x4c8] sm:$0xff]
    %v1132 = vld [vmem:[#allocation5 + $0x4d0] sm:$0xff]
    %v1133 = vld [vmem:[#allocation5 + $0x4d8] sm:$0xff]
    %v1134 = vld [vmem:[#allocation5 + $0x4e0] sm:$0xff]
    %v1135 = vld [vmem:[#allocation5 + $0x4e8] sm:$0xff]
    %v1136 = vld [vmem:[#allocation5 + $0x4f0] sm:$0xff]
    %v1137 = vld [vmem:[#allocation5 + $0x4f8] sm:$0xff]
    %v1138 = vld [vmem:[#allocation5 + $0x500] sm:$0xff]
    %v1139 = vld [vmem:[#allocation5 + $0x508] sm:$0xff]
    %v1140 = vld [vmem:[#allocation5 + $0x510] sm:$0xff]
    %v1141 = vld [vmem:[#allocation5 + $0x518] sm:$0xff]
    %v1142 = vld [vmem:[#allocation5 + $0x520] sm:$0xff]
    %v1143 = vld [vmem:[#allocation5 + $0x528] sm:$0xff]
    %v1144 = vld [vmem:[#allocation5 + $0x530] sm:$0xff]
    %v1145 = vld [vmem:[#allocation5 + $0x538] sm:$0xff]
    %v1146 = vld [vmem:[#allocation5 + $0x540] sm:$0xff]
    %v1147 = vld [vmem:[#allocation5 + $0x548] sm:$0xff]
    %v1148 = vld [vmem:[#allocation5 + $0x550] sm:$0xff]
    %v1149 = vld [vmem:[#allocation5 + $0x558] sm:$0xff]
    %v1150 = vld [vmem:[#allocation5 + $0x560] sm:$0xff]
    %v1151 = vld [vmem:[#allocation5 + $0x568] sm:$0xff]
    %v1152 = vld [vmem:[#allocation5 + $0x570] sm:$0xff]
    %v1153 = vld [vmem:[#allocation5 + $0x578] sm:$0xff]
    %v1154 = vld [vmem:[#allocation5 + $0x580] sm:$0xff]
    %v1155 = vld [vmem:[#allocation5 + $0x588] sm:$0xff]
    %v1156 = vld [vmem:[#allocation5 + $0x590] sm:$0xff]
    %v1157 = vld [vmem:[#allocation5 + $0x598] sm:$0xff]
    %v1158 = vld [vmem:[#allocation5 + $0x5a0] sm:$0xff]
    %v1159 = vld [vmem:[#allocation5 + $0x5a8] sm:$0xff]
    %v1160 = vld [vmem:[#allocation5 + $0x5b0] sm:$0xff]
    %v1161 = vld [vmem:[#allocation5 + $0x5b8] sm:$0xff]
    %v1162 = vld [vmem:[#allocation5 + $0x5c0] sm:$0xff]
    %v1163 = vld [vmem:[#allocation5 + $0x5c8] sm:$0xff]
    %v1164 = vld [vmem:[#allocation5 + $0x5d0] sm:$0xff]
    %v1165 = vld [vmem:[#allocation5 + $0x5d8] sm:$0xff]
    %v1166 = vld [vmem:[#allocation5 + $0x5e0] sm:$0xff]
    %v1167 = vld [vmem:[#allocation5 + $0x5e8] sm:$0xff]
    %v1168 = vld [vmem:[#allocation5 + $0x5f0] sm:$0xff]
    %v1169 = vld [vmem:[#allocation5 + $0x5f8] sm:$0xff]
    %1170 = vmatprep.subr.mxu0 %v1069
    %1171 = vmatpush1.msra.mxu0 %v1068
    %1172 = vmatprep.subr.mxu0 %v1063
    %1173 = vmatpush1.msra.mxu0 %v1062
    %1174 = vmatprep.subr.mxu0 %v1057
    %1175 = vmatpush1.msra.mxu0 %v1056
    %1176 = vmatprep.subr.mxu0 %v1051
    %1177 = vmatpush1.msra.mxu0 %v1050
    %1178 = vmatprep.subr.mxu0 %v1045
    %1179 = vmatpush1.msra.mxu0 %v1044
    %1180 = vmatprep.subr.mxu0 %v1039
    %1181 = vmatpush1.msra.mxu0 %v1038
    %1182 = vmatprep.subr.mxu0 %v1033
    %1183 = vmatpush1.msra.mxu0 %v1032
    %1184 = vmatprep.subr.mxu0 %v1027
    %1185 = vmatpush1.msra.mxu0 %v1026
    %1186 = vmatprep.subr.mxu0 %v1021
    %1187 = vmatpush1.msra.mxu0 %v1020
    %1188 = vmatprep.subr.mxu0 %v1015
    %1189 = vmatpush1.msra.mxu0 %v1014
    %1190 = vmatprep.subr.mxu0 %v1009
    %1191 = vmatpush1.msra.mxu0 %v1008
    %1192 = vmatprep.subr.mxu0 %v1003
    %1193 = vmatpush1.msra.mxu0 %v1002
    %1194 = vmatprep.subr.mxu0 %v997
    %1195 = vmatpush1.msra.mxu0 %v996
    %1196 = vmatprep.subr.mxu0 %v991
    %1197 = vmatpush1.msra.mxu0 %v990
    %1198 = vmatprep.subr.mxu0 %v985
    %1199 = vmatpush1.msra.mxu0 %v984
    %1200 = vmatprep.subr.mxu0 %v979
    %1201 = vmatpush1.msra.mxu0 %v978
    %1202 = vmatprep.subr.mxu0 %v1165
    %1203 = vmatpush2.msra.mxu0 %v1164
    %1204 = vmatprep.subr.mxu0 %v1159
    %1205 = vmatpush2.msra.mxu0 %v1158
    %1206 = vmatprep.subr.mxu0 %v1153
    %1207 = vmatpush2.msra.mxu0 %v1152
    %1208 = vmatprep.subr.mxu0 %v1147
    %1209 = vmatpush2.msra.mxu0 %v1146
    %1210 = vmatprep.subr.mxu0 %v1141
    %1211 = vmatpush2.msra.mxu0 %v1140
    %1212 = vmatprep.subr.mxu0 %v1135
    %1213 = vmatpush2.msra.mxu0 %v1134
    %1214 = vmatprep.subr.mxu0 %v1129
    %1215 = vmatpush2.msra.mxu0 %v1128
    %1216 = vmatprep.subr.mxu0 %v1123
    %1217 = vmatpush2.msra.mxu0 %v1122
    %1218 = vmatprep.subr.mxu0 %v1117
    %1219 = vmatpush2.msra.mxu0 %v1116
    %1220 = vmatprep.subr.mxu0 %v1111
    %1221 = vmatpush2.msra.mxu0 %v1110
    %1222 = vmatprep.subr.mxu0 %v1105
    %1223 = vmatpush2.msra.mxu0 %v1104
    %1224 = vmatprep.subr.mxu0 %v1099
    %1225 = vmatpush2.msra.mxu0 %v1098
    %1226 = vmatprep.subr.mxu0 %v1093
    %1227 = vmatpush2.msra.mxu0 %v1092
    %1228 = vmatprep.subr.mxu0 %v1087
    %1229 = vmatpush2.msra.mxu0 %v1086
    %1230 = vmatprep.subr.mxu0 %v1081
    %1231 = vmatpush2.msra.mxu0 %v1080
    %1232 = vmatprep.subr.mxu0 %v1075
    %1233 = vmatpush2.msra.mxu0 %v1074
    %1234 = vmatprep.mubr.f32.mxu0 %v969
    %1235 = vmatmul.mubr.f32.gmra.mxu0 %v968
    %v1236 = vpop.f32.mrf.mxu0
    %v1237 = vadd.f32 0.0, %v1236
    %v1238 = vpop.f32.mrf.mxu0
    %v1239 = vadd.f32 0.0, %v1238
    %1240 = vmatprep.mubr.f32.mxu0 %v971
    %1241 = vmatmul.mubr.f32.gmra.mxu0 %v970
    %v1242 = vpop.f32.mrf.mxu0
    %v1243 = vadd.f32 0.0, %v1242
    %v1244 = vpop.f32.mrf.mxu0
    %v1245 = vadd.f32 0.0, %v1244
    %1246 = vmatprep.mubr.f32.mxu0 %v973
    %1247 = vmatmul.mubr.f32.gmra.mxu0 %v972
    %v1248 = vpop.f32.mrf.mxu0
    %v1249 = vadd.f32 0.0, %v1248
    %v1250 = vpop.f32.mrf.mxu0
    %v1251 = vadd.f32 0.0, %v1250
    %1252 = vmatprep.mubr.f32.mxu0 %v975
    %1253 = vmatmul.mubr.f32.gmra.mxu0 %v974
    %v1254 = vpop.f32.mrf.mxu0
    %v1255 = vadd.f32 0.0, %v1254
    %v1256 = vpop.f32.mrf.mxu0
    %v1257 = vadd.f32 0.0, %v1256
    %1258 = vdwg.mxu0
    %1259 = vmatprep.subr.mxu0 %v1071
    %1260 = vmatpush1.msra.mxu0 %v1070
    %1261 = vmatprep.subr.mxu0 %v1065
    %1262 = vmatpush1.msra.mxu0 %v1064
    %1263 = vmatprep.subr.mxu0 %v1059
    %1264 = vmatpush1.msra.mxu0 %v1058
    %1265 = vmatprep.subr.mxu0 %v1053
    %1266 = vmatpush1.msra.mxu0 %v1052
    %1267 = vmatprep.subr.mxu0 %v1047
    %1268 = vmatpush1.msra.mxu0 %v1046
    %1269 = vmatprep.subr.mxu0 %v1041
    %1270 = vmatpush1.msra.mxu0 %v1040
    %1271 = vmatprep.subr.mxu0 %v1035
    %1272 = vmatpush1.msra.mxu0 %v1034
    %1273 = vmatprep.subr.mxu0 %v1029
    %1274 = vmatpush1.msra.mxu0 %v1028
    %1275 = vmatprep.subr.mxu0 %v1023
    %1276 = vmatpush1.msra.mxu0 %v1022
    %1277 = vmatprep.subr.mxu0 %v1017
    %1278 = vmatpush1.msra.mxu0 %v1016
    %1279 = vmatprep.subr.mxu0 %v1011
    %1280 = vmatpush1.msra.mxu0 %v1010
    %1281 = vmatprep.subr.mxu0 %v1005
    %1282 = vmatpush1.msra.mxu0 %v1004
    %1283 = vmatprep.subr.mxu0 %v999
    %1284 = vmatpush1.msra.mxu0 %v998
    %1285 = vmatprep.subr.mxu0 %v993
    %1286 = vmatpush1.msra.mxu0 %v992
    %1287 = vmatprep.subr.mxu0 %v987
    %1288 = vmatpush1.msra.mxu0 %v986
    %1289 = vmatprep.subr.mxu0 %v981
    %1290 = vmatpush1.msra.mxu0 %v980
    %1291 = vmatprep.subr.mxu0 %v1167
    %1292 = vmatpush2.msra.mxu0 %v1166
    %1293 = vmatprep.subr.mxu0 %v1161
    %1294 = vmatpush2.msra.mxu0 %v1160
    %1295 = vmatprep.subr.mxu0 %v1155
    %1296 = vmatpush2.msra.mxu0 %v1154
    %1297 = vmatprep.subr.mxu0 %v1149
    %1298 = vmatpush2.msra.mxu0 %v1148
    %1299 = vmatprep.subr.mxu0 %v1143
    %1300 = vmatpush2.msra.mxu0 %v1142
    %1301 = vmatprep.subr.mxu0 %v1137
    %1302 = vmatpush2.msra.mxu0 %v1136
    %1303 = vmatprep.subr.mxu0 %v1131
    %1304 = vmatpush2.msra.mxu0 %v1130
    %1305 = vmatprep.subr.mxu0 %v1125
    %1306 = vmatpush2.msra.mxu0 %v1124
    %1307 = vmatprep.subr.mxu0 %v1119
    %1308 = vmatpush2.msra.mxu0 %v1118
    %1309 = vmatprep.subr.mxu0 %v1113
    %1310 = vmatpush2.msra.mxu0 %v1112
    %1311 = vmatprep.subr.mxu0 %v1107
    %1312 = vmatpush2.msra.mxu0 %v1106
    %1313 = vmatprep.subr.mxu0 %v1101
    %1314 = vmatpush2.msra.mxu0 %v1100
    %1315 = vmatprep.subr.mxu0 %v1095
    %1316 = vmatpush2.msra.mxu0 %v1094
    %1317 = vmatprep.subr.mxu0 %v1089
    %1318 = vmatpush2.msra.mxu0 %v1088
    %1319 = vmatprep.subr.mxu0 %v1083
    %1320 = vmatpush2.msra.mxu0 %v1082
    %1321 = vmatprep.subr.mxu0 %v1077
    %1322 = vmatpush2.msra.mxu0 %v1076
    %1323 = vmatprep.mubr.f32.mxu0 %v969
    %1324 = vmatmul.mubr.f32.gmra.mxu0 %v968
    %v1325 = vpop.f32.mrf.mxu0
    %v1326 = vadd.f32 0.0, %v1325
    %v1327 = vpop.f32.mrf.mxu0
    %v1328 = vadd.f32 0.0, %v1327
    %1329 = vmatprep.mubr.f32.mxu0 %v971
    %1330 = vmatmul.mubr.f32.gmra.mxu0 %v970
    %v1331 = vpop.f32.mrf.mxu0
    %v1332 = vadd.f32 0.0, %v1331
    %v1333 = vpop.f32.mrf.mxu0
    %v1334 = vadd.f32 0.0, %v1333
    %1335 = vmatprep.mubr.f32.mxu0 %v973
    %1336 = vmatmul.mubr.f32.gmra.mxu0 %v972
    %v1337 = vpop.f32.mrf.mxu0
    %v1338 = vadd.f32 0.0, %v1337
    %v1339 = vpop.f32.mrf.mxu0
    %v1340 = vadd.f32 0.0, %v1339
    %1341 = vmatprep.mubr.f32.mxu0 %v975
    %1342 = vmatmul.mubr.f32.gmra.mxu0 %v974
    %v1343 = vpop.f32.mrf.mxu0
    %v1344 = vadd.f32 0.0, %v1343
    %v1345 = vpop.f32.mrf.mxu0
    %v1346 = vadd.f32 0.0, %v1345
    %1347 = vdwg.mxu0
    %1348 = vmatprep.subr.mxu0 %v1073
    %1349 = vmatpush1.msra.mxu0 %v1072
    %1350 = vmatprep.subr.mxu0 %v1067
    %1351 = vmatpush1.msra.mxu0 %v1066
    %1352 = vmatprep.subr.mxu0 %v1061
    %1353 = vmatpush1.msra.mxu0 %v1060
    %1354 = vmatprep.subr.mxu0 %v1055
    %1355 = vmatpush1.msra.mxu0 %v1054
    %1356 = vmatprep.subr.mxu0 %v1049
    %1357 = vmatpush1.msra.mxu0 %v1048
    %1358 = vmatprep.subr.mxu0 %v1043
    %1359 = vmatpush1.msra.mxu0 %v1042
    %1360 = vmatprep.subr.mxu0 %v1037
    %1361 = vmatpush1.msra.mxu0 %v1036
    %1362 = vmatprep.subr.mxu0 %v1031
    %1363 = vmatpush1.msra.mxu0 %v1030
    %1364 = vmatprep.subr.mxu0 %v1025
    %1365 = vmatpush1.msra.mxu0 %v1024
    %1366 = vmatprep.subr.mxu0 %v1019
    %1367 = vmatpush1.msra.mxu0 %v1018
    %1368 = vmatprep.subr.mxu0 %v1013
    %1369 = vmatpush1.msra.mxu0 %v1012
    %1370 = vmatprep.subr.mxu0 %v1007
    %1371 = vmatpush1.msra.mxu0 %v1006
    %1372 = vmatprep.subr.mxu0 %v1001
    %1373 = vmatpush1.msra.mxu0 %v1000
    %1374 = vmatprep.subr.mxu0 %v995
    %1375 = vmatpush1.msra.mxu0 %v994
    %1376 = vmatprep.subr.mxu0 %v989
    %1377 = vmatpush1.msra.mxu0 %v988
    %1378 = vmatprep.subr.mxu0 %v983
    %1379 = vmatpush1.msra.mxu0 %v982
    %1380 = vmatprep.subr.mxu0 %v1169
    %1381 = vmatpush2.msra.mxu0 %v1168
    %1382 = vmatprep.subr.mxu0 %v1163
    %1383 = vmatpush2.msra.mxu0 %v1162
    %1384 = vmatprep.subr.mxu0 %v1157
    %1385 = vmatpush2.msra.mxu0 %v1156
    %1386 = vmatprep.subr.mxu0 %v1151
    %1387 = vmatpush2.msra.mxu0 %v1150
    %1388 = vmatprep.subr.mxu0 %v1145
    %1389 = vmatpush2.msra.mxu0 %v1144
    %1390 = vmatprep.subr.mxu0 %v1139
    %1391 = vmatpush2.msra.mxu0 %v1138
    %1392 = vmatprep.subr.mxu0 %v1133
    %1393 = vmatpush2.msra.mxu0 %v1132
    %1394 = vmatprep.subr.mxu0 %v1127
    %1395 = vmatpush2.msra.mxu0 %v1126
    %1396 = vmatprep.subr.mxu0 %v1121
    %1397 = vmatpush2.msra.mxu0 %v1120
    %1398 = vmatprep.subr.mxu0 %v1115
    %1399 = vmatpush2.msra.mxu0 %v1114
    %1400 = vmatprep.subr.mxu0 %v1109
    %1401 = vmatpush2.msra.mxu0 %v1108
    %1402 = vmatprep.subr.mxu0 %v1103
    %1403 = vmatpush2.msra.mxu0 %v1102
    %1404 = vmatprep.subr.mxu0 %v1097
    %1405 = vmatpush2.msra.mxu0 %v1096
    %1406 = vmatprep.subr.mxu0 %v1091
    %1407 = vmatpush2.msra.mxu0 %v1090
    %1408 = vmatprep.subr.mxu0 %v1085
    %1409 = vmatpush2.msra.mxu0 %v1084
    %1410 = vmatprep.subr.mxu0 %v1079
    %1411 = vmatpush2.msra.mxu0 %v1078
    %1412 = vmatprep.mubr.f32.mxu0 %v969
    %1413 = vmatmul.mubr.f32.gmra.mxu0 %v968
    %v1414 = vpop.f32.mrf.mxu0
    %v1415 = vadd.f32 0.0, %v1414
    %v1416 = vpop.f32.mrf.mxu0
    %v1417 = vadd.f32 0.0, %v1416
    %1418 = vmatprep.mubr.f32.mxu0 %v971
    %1419 = vmatmul.mubr.f32.gmra.mxu0 %v970
    %v1420 = vpop.f32.mrf.mxu0
    %v1421 = vadd.f32 0.0, %v1420
    %v1422 = vpop.f32.mrf.mxu0
    %v1423 = vadd.f32 0.0, %v1422
    %1424 = vmatprep.mubr.f32.mxu0 %v973
    %1425 = vmatmul.mubr.f32.gmra.mxu0 %v972
    %v1426 = vpop.f32.mrf.mxu0
    %v1427 = vadd.f32 0.0, %v1426
    %v1428 = vpop.f32.mrf.mxu0
    %v1429 = vadd.f32 0.0, %v1428
    %1430 = vmatprep.mubr.f32.mxu0 %v975
    %1431 = vmatmul.mubr.f32.gmra.mxu0 %v974
    %v1432 = vpop.f32.mrf.mxu0
    %v1433 = vadd.f32 0.0, %v1432
    %v1434 = vpop.f32.mrf.mxu0
    %v1435 = vadd.f32 0.0, %v1434
    %1436 = vdwg.mxu0
    %v1437 = vrot.slane %v1237, 7
    %v1438 = vrot.slane %v1239, 7
    %v1439 = vrot.slane %v1243, 7
    %v1440 = vrot.slane %v1245, 7
    %v1441 = vrot.slane %v1249, 7
    %v1442 = vrot.slane %v1251, 7
    %v1443 = vrot.slane %v1255, 7
    %v1444 = vrot.slane %v1257, 7
    %v1445 = vsel %vm615, %v1441, %v1443
    %v1446 = vsel %vm615, %v1442, %v1444
    %v1447 = vsel %vm615, %v1439, %v1441
    %v1448 = vsel %vm615, %v1440, %v1442
    %v1449 = vsel %vm615, %v1437, %v1439
    %v1450 = vsel %vm615, %v1438, %v1440
    %v1451 = vsel %vm615, %v1443, %v1437
    %v1452 = vsel %vm615, %v1444, %v1438
    %v1453 = vrot.slane %v1415, 1
    %v1454 = vrot.slane %v1417, 1
    %v1455 = vrot.slane %v1421, 1
    %v1456 = vrot.slane %v1423, 1
    %v1457 = vrot.slane %v1427, 1
    %v1458 = vrot.slane %v1429, 1
    %v1459 = vrot.slane %v1433, 1
    %v1460 = vrot.slane %v1435, 1
    %v1461 = vsel %vm632, %v1457, %v1459
    %v1462 = vsel %vm632, %v1458, %v1460
    %v1463 = vsel %vm632, %v1455, %v1457
    %v1464 = vsel %vm632, %v1456, %v1458
    %v1465 = vsel %vm632, %v1453, %v1455
    %v1466 = vsel %vm632, %v1454, %v1456
    %v1467 = vsel %vm632, %v1459, %v1453
    %v1468 = vsel %vm632, %v1460, %v1454
    %v1469 = vmul.f32 %v122, %v1451
    %v1470 = vmul.f32 %v122, %v1452
    %v1471 = vmul.f32 %v123, %v1449
    %v1472 = vmul.f32 %v123, %v1450
    %v1473 = vmul.f32 %v124, %v1447
    %v1474 = vmul.f32 %v124, %v1448
    %v1475 = vmul.f32 %v125, %v1445
    %v1476 = vmul.f32 %v125, %v1446
    %v1477 = vadd.f32 %v1326, %v1469
    %v1478 = vadd.f32 %v1328, %v1470
    %v1479 = vadd.f32 %v1332, %v1471
    %v1480 = vadd.f32 %v1334, %v1472
    %v1481 = vadd.f32 %v1338, %v1473
    %v1482 = vadd.f32 %v1340, %v1474
    %v1483 = vadd.f32 %v1344, %v1475
    %v1484 = vadd.f32 %v1346, %v1476
    %v1485 = vmul.f32 %v134, %v1465
    %v1486 = vmul.f32 %v134, %v1466
    %v1487 = vmul.f32 %v135, %v1463
    %v1488 = vmul.f32 %v135, %v1464
    %v1489 = vmul.f32 %v136, %v1461
    %v1490 = vmul.f32 %v136, %v1462
    %v1491 = vmul.f32 %v137, %v1467
    %v1492 = vmul.f32 %v137, %v1468
    %v1493 = vadd.f32 %v1477, %v1485
    %v1494 = vadd.f32 %v1478, %v1486
    %v1495 = vadd.f32 %v1479, %v1487
    %v1496 = vadd.f32 %v1480, %v1488
    %v1497 = vadd.f32 %v1481, %v1489
    %v1498 = vadd.f32 %v1482, %v1490
    %v1499 = vadd.f32 %v1483, %v1491
    %v1500 = vadd.f32 %v1484, %v1492
    %v1501 = vadd.f32 %v1493, %v1495
    %v1502 = vadd.f32 %v1501, %v1497
    %v1503 = vadd.f32 %v1502, %v1499
    %v1504 = vrot.slane %v1503, 4
    %v1505 = vadd.f32 %v1503, %v1504
    %v1506 = vrot.slane %v1505, 2
    %v1507 = vadd.f32 %v1505, %v1506
    %v1508 = vrot.slane %v1507, 1
    %v1509 = vadd.f32 %v1507, %v1508
    %v1510 = vadd.f32 %v1494, %v1496
    %v1511 = vadd.f32 %v1510, %v1498
    %v1512 = vadd.f32 %v1511, %v1500
    %v1513 = vrot.slane %v1512, 4
    %v1514 = vadd.f32 %v1512, %v1513
    %v1515 = vrot.slane %v1514, 2
    %v1516 = vadd.f32 %v1514, %v1515
    %v1517 = vrot.slane %v1516, 1
    %v1518 = vadd.f32 %v1516, %v1517
    %v1519 = vmul.f32 %v1493, %v1493
    %v1520 = vmul.f32 %v1494, %v1494
    %v1521 = vmul.f32 %v1495, %v1495
    %v1522 = vmul.f32 %v1496, %v1496
    %v1523 = vmul.f32 %v1497, %v1497
    %v1524 = vmul.f32 %v1498, %v1498
    %v1525 = vmul.f32 %v1499, %v1499
    %v1526 = vmul.f32 %v1500, %v1500
    %v1527 = vadd.f32 %v1519, %v1521
    %v1528 = vadd.f32 %v1527, %v1523
    %v1529 = vadd.f32 %v1528, %v1525
    %v1530 = vrot.slane %v1529, 4
    %v1531 = vadd.f32 %v1529, %v1530
    %v1532 = vrot.slane %v1531, 2
    %v1533 = vadd.f32 %v1531, %v1532
    %v1534 = vrot.slane %v1533, 1
    %v1535 = vadd.f32 %v1533, %v1534
    %v1536 = vadd.f32 %v1520, %v1522
    %v1537 = vadd.f32 %v1536, %v1524
    %v1538 = vadd.f32 %v1537, %v1526
    %v1539 = vrot.slane %v1538, 4
    %v1540 = vadd.f32 %v1538, %v1539
    %v1541 = vrot.slane %v1540, 2
    %v1542 = vadd.f32 %v1540, %v1541
    %v1543 = vrot.slane %v1542, 1
    %v1544 = vadd.f32 %v1542, %v1543
    %v1545 = vsel %vm717, %v1509, %v1535
    %v1546 = vsel %vm717, %v1518, %v1544
    %1547 = vmatprep.subr.mxu0 0.0
    %1548 = vmatpush1.msra.mxu0 %v735
    %1549 = vmatprep.subr.mxu0 0.0
    %1550 = vmatpush1.msra.mxu0 %v734
    %1551 = vmatprep.subr.mxu0 0.0
    %1552 = vmatpush1.msra.mxu0 %v733
    %1553 = vmatprep.subr.mxu0 0.0
    %1554 = vmatpush1.msra.mxu0 %v732
    %1555 = vmatprep.subr.mxu0 0.0
    %1556 = vmatpush1.msra.mxu0 %v731
    %1557 = vmatprep.subr.mxu0 0.0
    %1558 = vmatpush1.msra.mxu0 %v730
    %1559 = vmatprep.subr.mxu0 0.0
    %1560 = vmatpush1.msra.mxu0 %v729
    %1561 = vmatprep.subr.mxu0 0.0
    %1562 = vmatpush1.msra.mxu0 %v728
    %1563 = vmatprep.subr.mxu0 0.0
    %1564 = vmatpush1.msra.mxu0 %v727
    %1565 = vmatprep.subr.mxu0 0.0
    %1566 = vmatpush1.msra.mxu0 %v726
    %1567 = vmatprep.subr.mxu0 0.0
    %1568 = vmatpush1.msra.mxu0 %v725
    %1569 = vmatprep.subr.mxu0 0.0
    %1570 = vmatpush1.msra.mxu0 %v724
    %1571 = vmatprep.subr.mxu0 0.0
    %1572 = vmatpush1.msra.mxu0 %v723
    %1573 = vmatprep.subr.mxu0 0.0
    %1574 = vmatpush1.msra.mxu0 %v722
    %1575 = vmatprep.subr.mxu0 0.0
    %1576 = vmatpush1.msra.mxu0 %v721
    %1577 = vmatprep.subr.mxu0 0.0
    %1578 = vmatpush1.msra.mxu0 %v720
    %1579 = vmatprep.subr.mxu0 0.0
    %1580 = vmatpush2.msra.mxu0 %v751
    %1581 = vmatprep.subr.mxu0 0.0
    %1582 = vmatpush2.msra.mxu0 %v750
    %1583 = vmatprep.subr.mxu0 0.0
    %1584 = vmatpush2.msra.mxu0 %v749
    %1585 = vmatprep.subr.mxu0 0.0
    %1586 = vmatpush2.msra.mxu0 %v748
    %1587 = vmatprep.subr.mxu0 0.0
    %1588 = vmatpush2.msra.mxu0 %v747
    %1589 = vmatprep.subr.mxu0 0.0
    %1590 = vmatpush2.msra.mxu0 %v746
    %1591 = vmatprep.subr.mxu0 0.0
    %1592 = vmatpush2.msra.mxu0 %v745
    %1593 = vmatprep.subr.mxu0 0.0
    %1594 = vmatpush2.msra.mxu0 %v744
    %1595 = vmatprep.subr.mxu0 0.0
    %1596 = vmatpush2.msra.mxu0 %v743
    %1597 = vmatprep.subr.mxu0 0.0
    %1598 = vmatpush2.msra.mxu0 %v742
    %1599 = vmatprep.subr.mxu0 0.0
    %1600 = vmatpush2.msra.mxu0 %v741
    %1601 = vmatprep.subr.mxu0 0.0
    %1602 = vmatpush2.msra.mxu0 %v740
    %1603 = vmatprep.subr.mxu0 0.0
    %1604 = vmatpush2.msra.mxu0 %v739
    %1605 = vmatprep.subr.mxu0 0.0
    %1606 = vmatpush2.msra.mxu0 %v738
    %1607 = vmatprep.subr.mxu0 0.0
    %1608 = vmatpush2.msra.mxu0 %v737
    %1609 = vmatprep.subr.mxu0 0.0
    %1610 = vmatpush2.msra.mxu0 %v736
    %1611 = vmatprep.mubr.f32.mxu0 %v1546
    %1612 = vmatmul.mubr.f32.gmra.mxu0 %v1545
    %v1613 = vpop.f32.mrf.mxu0
    %v1614 = vadd.f32 0.0, %v1613
    %v1615 = vpop.f32.mrf.mxu0
    %1616 = vdwg.mxu0
    %v1617 = vmul.f32 %v1614, 0.001953125
    %v1618 = vmul.f32 %v1617, %v1617
    %v1620 = vrot.slane %v1618, 7
    %v1622 = vsub.f32 %v1617, %v1620
    %v1623 = vadd.f32 %v1622, 1e-05
    %v1624 = vrsqrt.pop %v1623
    %v1627 = vunpack.c.l.s4 1966171168
    %v1628 = vunpack.c.0.s8 %v1627
    %v1629 = vlaneseq
    %v1630 = vshrl.u32 %v1629, 7
    %v1631 = vsub.s32 %v1628, %v1630
    %v1632 = vrot.slane %v1624, %v1631
    %v1633 = vcombine.high %v1632, %v1632
    %v1635 = vunpack.c.l.s4 1966171168
    %v1636 = vunpack.c.0.s8 %v1635
    %v1637 = vlaneseq
    %v1638 = vshrl.u32 %v1637, 7
    %v1639 = vsub.s32 %v1636, %v1638
    %v1640 = vrot.slane %v1633, %v1639
    %v1642 = vmul.f32 %v976, %v1640
    %v1643 = vmul.f32 %v1617, %v1642
    %v1644 = vsub.f32 %v977, %v1643
    %v1646 = vlaneseq
    %v1647 = vshrl.u32 %v1646, 7
    %v1648 = vsub.s32 0, %v1647
    %v1649 = vrot.slane %v1644, %v1648
    %v1651 = vsel %vm717, %v1642, %v1649
    %v1653 = vsel %vm861, %v1651, 0
    %1655 = vmatprep.subr.mxu0 0.0
    %1656 = vmatpush1.msra.mxu0 0.0
    %1657 = vmatprep.subr.mxu0 0.0
    %1658 = vmatpush1.msra.mxu0 0.0
    %1659 = vmatprep.subr.mxu0 0.0
    %1660 = vmatpush1.msra.mxu0 0.0
    %1661 = vmatprep.subr.mxu0 0.0
    %1662 = vmatpush1.msra.mxu0 0.0
    %1663 = vmatprep.subr.mxu0 0.0
    %1664 = vmatpush1.msra.mxu0 0.0
    %1665 = vmatprep.subr.mxu0 0.0
    %1666 = vmatpush1.msra.mxu0 0.0
    %1667 = vmatprep.subr.mxu0 0.0
    %1668 = vmatpush1.msra.mxu0 0.0
    %1669 = vmatprep.subr.mxu0 0.0
    %1670 = vmatpush1.msra.mxu0 0.0
    %1671 = vmatprep.subr.mxu0 0.0
    %1672 = vmatpush1.msra.mxu0 0.0
    %1673 = vmatprep.subr.mxu0 0.0
    %1674 = vmatpush1.msra.mxu0 0.0
    %1675 = vmatprep.subr.mxu0 0.0
    %1676 = vmatpush1.msra.mxu0 0.0
    %1677 = vmatprep.subr.mxu0 0.0
    %1678 = vmatpush1.msra.mxu0 0.0
    %1679 = vmatprep.subr.mxu0 0.0
    %1680 = vmatpush1.msra.mxu0 0.0
    %1681 = vmatprep.subr.mxu0 0.0
    %1682 = vmatpush1.msra.mxu0 0.0
    %1683 = vmatprep.subr.mxu0 %v860
    %1684 = vmatpush1.msra.mxu0 %v859
    %1685 = vmatprep.subr.mxu0 %v858
    %1686 = vmatpush1.msra.mxu0 %v857
    %1687 = vmatprep.subr.mxu0 0.0
    %1688 = vmatpush2.msra.mxu0 0.0
    %1689 = vmatprep.subr.mxu0 0.0
    %1690 = vmatpush2.msra.mxu0 0.0
    %1691 = vmatprep.subr.mxu0 0.0
    %1692 = vmatpush2.msra.mxu0 0.0
    %1693 = vmatprep.subr.mxu0 0.0
    %1694 = vmatpush2.msra.mxu0 0.0
    %1695 = vmatprep.subr.mxu0 0.0
    %1696 = vmatpush2.msra.mxu0 0.0
    %1697 = vmatprep.subr.mxu0 0.0
    %1698 = vmatpush2.msra.mxu0 0.0
    %1699 = vmatprep.subr.mxu0 0.0
    %1700 = vmatpush2.msra.mxu0 0.0
    %1701 = vmatprep.subr.mxu0 0.0
    %1702 = vmatpush2.msra.mxu0 0.0
    %1703 = vmatprep.subr.mxu0 0.0
    %1704 = vmatpush2.msra.mxu0 0.0
    %1705 = vmatprep.subr.mxu0 0.0
    %1706 = vmatpush2.msra.mxu0 0.0
    %1707 = vmatprep.subr.mxu0 0.0
    %1708 = vmatpush2.msra.mxu0 0.0
    %1709 = vmatprep.subr.mxu0 0.0
    %1710 = vmatpush2.msra.mxu0 0.0
    %1711 = vmatprep.subr.mxu0 0.0
    %1712 = vmatpush2.msra.mxu0 0.0
    %1713 = vmatprep.subr.mxu0 0.0
    %1714 = vmatpush2.msra.mxu0 0.0
    %1715 = vmatprep.subr.mxu0 0.0
    %1716 = vmatpush2.msra.mxu0 0.0
    %1717 = vmatprep.subr.mxu0 0.0
    %1718 = vmatpush2.msra.mxu0 0.0
    %1719 = vmatprep.mubr.f32.mxu0 0.0
    %1720 = vmatmul.mubr.f32.gmra.mxu0 %v1653
    %v1721 = vpop.f32.mrf.mxu0
    %v1722 = vadd.f32 0.0, %v1721
    %v1723 = vpop.f32.mrf.mxu0
    %v1724 = vadd.f32 0.0, %v1723
    %1725 = vdwg.mxu0
    %v1726 = vlaneseq
    %v1727 = vshrl.u32 %v1726, 7
    %v1728 = vsub.s32 0, %v1727
    %v1729 = vrot.slane %v1722, %v1728
    %v1730 = vlaneseq
    %v1731 = vshrl.u32 %v1730, 7
    %v1732 = vsub.s32 0, %v1731
    %v1733 = vrot.slane %v1724, %v1732
    %v1734 = vmul.f32 %v1493, %v1729
    %v1735 = vmul.f32 %v1494, %v1733
    %v1736 = vmul.f32 %v1495, %v1729
    %v1737 = vmul.f32 %v1496, %v1733
    %v1738 = vmul.f32 %v1497, %v1729
    %v1739 = vmul.f32 %v1498, %v1733
    %v1740 = vmul.f32 %v1499, %v1729
    %v1741 = vmul.f32 %v1500, %v1733
    %v1742 = vlaneseq
    %v1743 = vshrl.u32 %v1742, 7
    %v1744 = vsub.s32 1, %v1743
    %v1745 = vrot.slane %v1722, %v1744
    %v1746 = vlaneseq
    %v1747 = vshrl.u32 %v1746, 7
    %v1748 = vsub.s32 1, %v1747
    %v1749 = vrot.slane %v1724, %v1748
    %v1750 = vadd.f32 %v1734, %v1745
    %v1751 = vadd.f32 %v1735, %v1749
    %v1752 = vadd.f32 %v1736, %v1745
    %v1753 = vadd.f32 %v1737, %v1749
    %v1754 = vadd.f32 %v1738, %v1745
    %v1755 = vadd.f32 %v1739, %v1749
    %v1756 = vadd.f32 %v1740, %v1745
    %v1757 = vadd.f32 %v1741, %v1749
    %v1758 = vadd.f32 %v1750, %v138
    %v1759 = vadd.f32 %v1751, %v139
    %v1760 = vadd.f32 %v1752, %v140
    %v1761 = vadd.f32 %v1753, %v141
    %v1762 = vadd.f32 %v1754, %v142
    %v1763 = vadd.f32 %v1755, %v143
    %v1764 = vadd.f32 %v1756, %v144
    %v1765 = vadd.f32 %v1757, %v145
    %v1766 = vmax.f32 %v1758, 0.0
    %v1767 = vmax.f32 %v1759, 0.0
    %v1768 = vmax.f32 %v1760, 0.0
    %v1769 = vmax.f32 %v1761, 0.0
    %v1770 = vmax.f32 %v1762, 0.0
    %v1771 = vmax.f32 %v1763, 0.0
    %v1772 = vmax.f32 %v1764, 0.0
    %v1773 = vmax.f32 %v1765, 0.0
    %1774 = vst [vmem:[#allocation7] sm:$0xff] %v1766
    %1775 = vst [vmem:[#allocation7 + $0x8] sm:$0xff] %v1767
    %1776 = vst [vmem:[#allocation7 + $0x10] sm:$0xff] %v1768
    %1777 = vst [vmem:[#allocation7 + $0x18] sm:$0xff] %v1769
    %1778 = vst [vmem:[#allocation7 + $0x20] sm:$0xff] %v1770
    %1779 = vst [vmem:[#allocation7 + $0x28] sm:$0xff] %v1771
    %1780 = vst [vmem:[#allocation7 + $0x30] sm:$0xff] %v1772
    %1781 = vst [vmem:[#allocation7 + $0x38] sm:$0xff] %v1773
    // Predicated region
    $region46: #{tpu_custom_call.1} parent=1 // pred_check
      _
    $region47: #{tpu_custom_call.1} parent=1 // pred_check_branch
      %1783 = sbr.rel (0) target = $region49
    $region48: #{tpu_custom_call.1} parent=1 // pred_region
      %s1785 = ssub.s32 1024, 1024
      %1786 = vsyncadd [#allocation4], %s1785
      %s1787 = sshll.u32 [#allocation7], 4
      %s1788 = int_to_ptr.vmem [resolvable:$true] %s1787
      %1793 = dma.vmem_to_hbm [thread:$0]  %s1788, 1024, %s9, [#allocation4], 256, 256, 16
    $region49: #{tpu_custom_call.1} parent=1 // pred_fallthru
      _
    // Predicated region
    $region50: #{tpu_custom_call.1} parent=1 // pred_check
      _
    $region51: #{tpu_custom_call.1} parent=1 // pred_check_branch
      %1795 = sbr.rel (0) target = $region53
    $region52: #{tpu_custom_call.1} parent=1 // pred_region
      %1796 = dma.done [#allocation4], 1024
    $region53: #{tpu_custom_call.1} parent=1 // pred_fallthru
      _
    %1797 = vsyncpa [#allocation3], 1
    %1798 = vsyncpa [#allocation6], 1
    %1799 = vsyncpa [#allocation4], 1

</llo_original>
